<compile_context>
chip_gen: v6e
topology: v6e:2x2x1
jax: 0.10.0
libtpu: 0.0.40
codegen_flags: <defaults>
</compile_context>

<pallas_src>
import functools

import jax
import jax.numpy as jnp
from jax import lax
from jax.experimental import pallas as pl
from jax.experimental.pallas import tpu as pltpu


def _round_up(x, m):
    return ((x + m - 1) // m) * m


def _decoder_gru_kernel(h0_ref, x_ref,
                        w_ih_ref, w_hh_ref, b_i_ref, b_hn_ref,
                        w_fca_ref, b_fca_ref, w_fc_ref, b_fc_ref,
                        out_ref,
                        h_scr, gi_scr,
                        *, chunk_steps, batch, hidden, seq_len):
    """One time chunk per grid step: fused 3-gate input projection (single MXU matmul over
    the whole chunk), then the serial GRU recurrence with a single fused h @ W_hh matmul per
    step.  On the last chunk: dropout(identity) -> fc_add -> ReLU -> dropout -> fc."""
    c = pl.program_id(0)
    last = pl.num_programs(0) - 1
    Hp = hidden

    @pl.when(c == 0)
    def _():
        h_scr[...] = h0_ref[...].astype(jnp.float32)

    # ---- hoisted, gate-fused input projection for this chunk (one matmul, all 3 gates) ----
    x2d = x_ref[...].reshape(chunk_steps * batch, x_ref.shape[-1])   # merge leading dims
    gi = jnp.dot(x2d, w_ih_ref[...], preferred_element_type=jnp.float32) + b_i_ref[...]
    gi_scr[...] = gi.reshape(chunk_steps, batch, 3 * Hp)             # VMEM-resident slab

    # ---- hoisted loop invariants (broadcast_in_dim is not CSE'd inside loops) ----
    w_hh = w_hh_ref[...]
    b_hn = jnp.broadcast_to(b_hn_ref[...], (batch, Hp))
    needs_mask = (seq_len % chunk_steps) != 0

    def step(t, h):
        gi_t = gi_scr[t]                                             # (Bp, 3Hp) contiguous rows
        gh = jnp.dot(h.astype(w_hh.dtype), w_hh,
                     preferred_element_type=jnp.float32)             # one fused matmul / step
        r = jax.nn.sigmoid(gi_t[:, :Hp] + gh[:, :Hp])
        z = jax.nn.sigmoid(gi_t[:, Hp:2 * Hp] + gh[:, Hp:2 * Hp])
        n = jnp.tanh(gi_t[:, 2 * Hp:] + r * (gh[:, 2 * Hp:] + b_hn))
        h_new = (1.0 - z) * n + z * h
        if needs_mask:                                               # ignore time-padding steps
            h_new = jnp.where(c * chunk_steps + t < seq_len, h_new, h)
        return h_new

    h = lax.fori_loop(0, chunk_steps, step, h_scr[...], unroll=min(chunk_steps, 8))
    h_scr[...] = h

    # ---- head on the last chunk only; dropout(p=0.5) == identity (eval semantics) ----
    @pl.when(c == last)
    def _():
        hid = jnp.dot(h.astype(w_fca_ref.dtype), w_fca_ref[...],
                      preferred_element_type=jnp.float32) + b_fca_ref[...]
        hid = jnp.maximum(hid, 0.0)
        logits = jnp.dot(hid.astype(w_fc_ref.dtype), w_fc_ref[...],
                         preferred_element_type=jnp.float32) + b_fc_ref[...]
        out_ref[...] = logits.astype(out_ref.dtype)


def decoder_rnn_forward(v_features, i_features, params, *, time_chunk=32,
                        matmul_dtype=jnp.bfloat16):
    """v_features: (B, H) f32 initial hidden; i_features: (B, S, I) f32 (batch_first)."""
    B, S, I = i_features.shape
    H = v_features.shape[-1]
    FC = params["w_fc_add"].shape[-1]
    C = params["w_fc"].shape[-1]

    Bp = max(8, _round_up(B, 8))          # sublane-aligned batch
    Hp = _round_up(H, 128)                # lane-aligned per-gate width
    FCp = _round_up(FC, 128)
    Cp = _round_up(C, 128)                # lane-dense logits store
    Tc = min(S, time_chunk)
    Sp = _round_up(S, Tc)
    nc = Sp // Tc

    # ---- pad / fuse parameters once in the wrapper ----
    def pad_gates(w):  # (K, 3H) -> (K, 3Hp): each gate block padded to Hp lanes
        r, z, n = w[:, :H], w[:, H:2 * H], w[:, 2 * H:]
        pad = ((0, 0), (0, Hp - H))
        return jnp.concatenate([jnp.pad(r, pad), jnp.pad(z, pad), jnp.pad(n, pad)], axis=1)

    w_ih = pad_gates(params["w_ih"]).astype(matmul_dtype)                        # (I, 3Hp)
    w_hh = jnp.pad(pad_gates(params["w_hh"]),
                   ((0, Hp - H), (0, 0))).astype(matmul_dtype)                   # (Hp, 3Hp)
    b_rzn = jnp.concatenate([params["b_ih"][:, :2 * H] + params["b_hh"][:, :2 * H],
                             params["b_ih"][:, 2 * H:]], axis=1)                 # r/z folded
    b_i = pad_gates(b_rzn)                                                       # (1, 3Hp) f32
    b_hn = jnp.pad(params["b_hh"][:, 2 * H:], ((0, 0), (0, Hp - H)))             # (1, Hp)  f32
    w_fca = jnp.pad(params["w_fc_add"], ((0, Hp - H), (0, FCp - FC))).astype(matmul_dtype)
    b_fca = jnp.pad(params["b_fc_add"], ((0, 0), (0, FCp - FC)))
    w_fc = jnp.pad(params["w_fc"], ((0, FCp - FC), (0, Cp - C))).astype(matmul_dtype)
    b_fc = jnp.pad(params["b_fc"], ((0, 0), (0, Cp - C)))

    h0 = jnp.pad(v_features, ((0, Bp - B), (0, Hp - H)))                         # (Bp, Hp) f32
    # time-major (Sp, Bp, I) so each step reads a contiguous sublane block of the slab
    x = jnp.pad(i_features, ((0, Bp - B), (0, Sp - S), (0, 0)))
    x = jnp.transpose(x, (1, 0, 2)).astype(matmul_dtype)                         # (Sp, Bp, I)

    # ---- explicit VMEM budget: resident weights + 2x double-buffered chunk + scratch ----
    bpe = jnp.dtype(matmul_dtype).itemsize
    weight_bytes = (w_ih.size + w_hh.size + w_fca.size + w_fc.size) * bpe \
        + (b_i.size + b_hn.size + b_fca.size + b_fc.size + h0.size) * 4
    chunk_bytes = Tc * Bp * I * bpe
    scratch_bytes = Bp * Hp * 4 + Tc * Bp * 3 * Hp * 4
    out_bytes = Bp * Cp * 4
    vmem_est = weight_bytes + 2 * chunk_bytes + scratch_bytes + out_bytes
    vmem_limit = int(min(max(2 * vmem_est + (4 << 20), 32 << 20), 64 << 20))

    def resident(shape):
        return pl.BlockSpec(shape, lambda c, _n=len(shape): (0,) * _n)

    kernel = functools.partial(_decoder_gru_kernel, chunk_steps=Tc, batch=Bp,
                               hidden=Hp, seq_len=S)
    out = pl.pallas_call(
        kernel,
        out_shape=jax.ShapeDtypeStruct((Bp, Cp), jnp.float32),
        grid=(nc,),
        in_specs=[
            resident((Bp, Hp)),                                  # h0
            pl.BlockSpec((Tc, Bp, I), lambda c: (c, 0, 0)),      # x, streamed time chunks
            resident((I, 3 * Hp)),                               # w_ih (gate-fused)
            resident((Hp, 3 * Hp)),                              # w_hh (gate-fused)
            resident((1, 3 * Hp)),                               # b_i (r/z folded + b_in)
            resident((1, Hp)),                                   # b_hn
            resident((Hp, FCp)),                                 # w_fc_add
            resident((1, FCp)),                                  # b_fc_add
            resident((FCp, Cp)),                                 # w_fc
            resident((1, Cp)),                                   # b_fc
        ],
        out_specs=pl.BlockSpec((Bp, Cp), lambda c: (0, 0)),
        scratch_shapes=[pltpu.VMEM((Bp, Hp), jnp.float32),            # hidden state carry
                        pltpu.VMEM((Tc, Bp, 3 * Hp), jnp.float32)],   # hoisted gi slab
        compiler_params=pltpu.CompilerParams(
            dimension_semantics=("arbitrary",),
            vmem_limit_bytes=vmem_limit),
    )(h0, x, w_ih, w_hh, b_i, b_hn, w_fca, b_fca, w_fc, b_fc)
    return out[:B, :C]


def reference_forward(v_features, i_features, params):
    """Pure-JAX f32 reference mirroring the PyTorch forward (dropout as identity)."""
    H = v_features.shape[-1]

    def step(h, x_t):
        gi = x_t @ params["w_ih"] + params["b_ih"][0]
        gh = h @ params["w_hh"] + params["b_hh"][0]
        r = jax.nn.sigmoid(gi[:, :H] + gh[:, :H])
        z = jax.nn.sigmoid(gi[:, H:2 * H] + gh[:, H:2 * H])
        n = jnp.tanh(gi[:, 2 * H:] + r * gh[:, 2 * H:])
        return (1.0 - z) * n + z * h, None

    x_tm = jnp.transpose(i_features, (1, 0, 2))
    h_last, _ = jax.lax.scan(step, v_features, x_tm)
    hid = jnp.maximum(h_last @ params["w_fc_add"] + params["b_fc_add"][0], 0.0)
    return hid @ params["w_fc"] + params["b_fc"][0]


def init_params(key, input_size, hidden_size, fc_hidden_size, num_classes):
    ks = jax.random.split(key, 8)
    s = 0.1
    return {
        # stored transposed vs PyTorch: (in, out); PyTorch GRU gate order (r, z, n)
        "w_ih": s * jax.random.normal(ks[0], (input_size, 3 * hidden_size), jnp.float32),
        "w_hh": s * jax.random.normal(ks[1], (hidden_size, 3 * hidden_size), jnp.float32),
        "b_ih": s * jax.random.normal(ks[2], (1, 3 * hidden_size), jnp.float32),
        "b_hh": s * jax.random.normal(ks[3], (1, 3 * hidden_size), jnp.float32),
        "w_fc_add": s * jax.random.normal(ks[4], (hidden_size, fc_hidden_size), jnp.float32),
        "b_fc_add": s * jax.random.normal(ks[5], (1, fc_hidden_size), jnp.float32),
        "w_fc": s * jax.random.normal(ks[6], (fc_hidden_size, num_classes), jnp.float32),
        "b_fc": s * jax.random.normal(ks[7], (1, num_classes), jnp.float32),
    }


if __name__ == "__main__":
    # Small shapes consistent with the module: num_layers=1, unidirectional, cell='gru', add_fc=True
    B, S = 4, 8
    input_size, hidden_size, fc_hidden_size, num_classes = 16, 32, 24, 7

    key = jax.random.PRNGKey(0)
    k_v, k_i, k_p = jax.random.split(key, 3)

    v_features = jax.random.normal(k_v, (B, hidden_size), jnp.float32)     # initial hidden
    i_features = jax.random.normal(k_i, (B, S, input_size), jnp.float32)   # batch_first sequence
    params = init_params(k_p, input_size, hidden_size, fc_hidden_size, num_classes)

    out = decoder_rnn_forward(v_features, i_features, params)
    out = jax.block_until_ready(out)

    ref = reference_forward(v_features, i_features, params)
    assert out.shape == (B, num_classes)
    # bf16 matmul operands (f32 accumulation / gate math) -> looser tolerance vs f32 reference
    assert jnp.allclose(out, ref, rtol=2e-2, atol=2e-2), "Pallas output mismatch vs JAX reference"

    print("KERNEL_OK")
</pallas_src>

<mosaic_0001>
module attributes {stable_mosaic.version = 11 : i64} {
  func.func @_decoder_gru_kernel(%arg0: i32, %arg1: memref<8x128xf32, #tpu.memory_space<vmem>>, %arg2: memref<8x8x16xbf16, #tpu.memory_space<vmem>>, %arg3: memref<16x384xbf16, #tpu.memory_space<vmem>>, %arg4: memref<128x384xbf16, #tpu.memory_space<vmem>>, %arg5: memref<1x384xf32, #tpu.memory_space<vmem>>, %arg6: memref<1x128xf32, #tpu.memory_space<vmem>>, %arg7: memref<128x128xbf16, #tpu.memory_space<vmem>>, %arg8: memref<1x128xf32, #tpu.memory_space<vmem>>, %arg9: memref<128x128xbf16, #tpu.memory_space<vmem>>, %arg10: memref<1x128xf32, #tpu.memory_space<vmem>>, %arg11: memref<8x128xf32, #tpu.memory_space<vmem>>, %arg12: memref<8x128xf32, #tpu.memory_space<vmem>>, %arg13: memref<8x8x384xf32, #tpu.memory_space<vmem>>) attributes {dimension_semantics = [#tpu.dimension_semantics<arbitrary>], iteration_bounds = array<i64: 1>, scalar_prefetch = 0 : i64, scratch_operands = 2 : i64, tpu.core_type = #tpu.core_type<tc>, window_params = [{pipeline_mode = #tpu.pipeline_mode<synchronous>, transform_indices = @transform_0, window_bounds = array<i64: 8, 128>}, {transform_indices = @transform_1, window_bounds = array<i64: 8, 8, 16>}, {pipeline_mode = #tpu.pipeline_mode<synchronous>, transform_indices = @transform_2, window_bounds = array<i64: 16, 384>}, {pipeline_mode = #tpu.pipeline_mode<synchronous>, transform_indices = @transform_3, window_bounds = array<i64: 128, 384>}, {pipeline_mode = #tpu.pipeline_mode<synchronous>, transform_indices = @transform_4, window_bounds = array<i64: 1, 384>}, {pipeline_mode = #tpu.pipeline_mode<synchronous>, transform_indices = @transform_5, window_bounds = array<i64: 1, 128>}, {pipeline_mode = #tpu.pipeline_mode<synchronous>, transform_indices = @transform_6, window_bounds = array<i64: 128, 128>}, {pipeline_mode = #tpu.pipeline_mode<synchronous>, transform_indices = @transform_7, window_bounds = array<i64: 1, 128>}, {pipeline_mode = #tpu.pipeline_mode<synchronous>, transform_indices = @transform_8, window_bounds = array<i64: 128, 128>}, {pipeline_mode = #tpu.pipeline_mode<synchronous>, transform_indices = @transform_9, window_bounds = array<i64: 1, 128>}, {pipeline_mode = #tpu.pipeline_mode<synchronous>, transform_indices = @transform_10, window_bounds = array<i64: 8, 128>}]} {
    %c0_i32 = arith.constant 0 : i32
    %0 = arith.cmpi eq, %arg0, %c0_i32 : i32
    %1 = arith.extui %0 : i1 to i32
    %c0_i32_0 = arith.constant 0 : i32
    %2 = arith.cmpi ne, %1, %c0_i32_0 : i32
    scf.if %2 {
      %c0_69 = arith.constant 0 : index
      %c0_70 = arith.constant 0 : index
      %277 = vector.load %arg1[%c0_69, %c0_70] : memref<8x128xf32, #tpu.memory_space<vmem>>, vector<8x128xf32>
      %c0_71 = arith.constant 0 : index
      %c0_72 = arith.constant 0 : index
      %278 = vector.load %arg12[%c0_71, %c0_72] : memref<8x128xf32, #tpu.memory_space<vmem>>, vector<8x128xf32>
      tpu.vector_store %arg12[%c0_71, %c0_72], %277 {strides = array<i32>} : memref<8x128xf32, #tpu.memory_space<vmem>>, vector<8x128xf32>,
    } else {
    }
    %c0 = arith.constant 0 : index
    %c0_1 = arith.constant 0 : index
    %c0_2 = arith.constant 0 : index
    %3 = vector.load %arg2[%c0, %c0_1, %c0_2] : memref<8x8x16xbf16, #tpu.memory_space<vmem>>, vector<8x8x16xbf16>
    %4 = vector.shape_cast %3 : vector<8x8x16xbf16> to vector<64x16xbf16>
    %c0_3 = arith.constant 0 : index
    %c0_4 = arith.constant 0 : index
    %5 = vector.load %arg3[%c0_3, %c0_4] : memref<16x384xbf16, #tpu.memory_space<vmem>>, vector<16x384xbf16>
    %cst = arith.constant dense<0.000000e+00> : vector<64x384xf32>
    %6 = tpu.matmul %4, %5, %cst {dimension_numbers = #tpu.dot_dimension_numbers<[1], [0], [0], [1], [0, 0, 1, 1], [], []>} : vector<64x16xbf16>, vector<16x384xbf16>, vector<64x384xf32> -> vector<64x384xf32>
    %c0_5 = arith.constant 0 : index
    %c0_6 = arith.constant 0 : index
    %7 = vector.load %arg5[%c0_5, %c0_6] : memref<1x384xf32, #tpu.memory_space<vmem>>, vector<1x384xf32>
    %8 = vector.broadcast %7 : vector<1x384xf32> to vector<64x384xf32>
    %9 = arith.addf %6, %8 : vector<64x384xf32>
    %10 = vector.shape_cast %9 : vector<64x384xf32> to vector<8x8x384xf32>
    %c0_7 = arith.constant 0 : index
    %c0_8 = arith.constant 0 : index
    %c0_9 = arith.constant 0 : index
    %11 = vector.load %arg13[%c0_7, %c0_8, %c0_9] : memref<8x8x384xf32, #tpu.memory_space<vmem>>, vector<8x8x384xf32>
    tpu.vector_store %arg13[%c0_7, %c0_8, %c0_9], %10 {strides = array<i32>} : memref<8x8x384xf32, #tpu.memory_space<vmem>>, vector<8x8x384xf32>,
    %c0_10 = arith.constant 0 : index
    %c0_11 = arith.constant 0 : index
    %12 = vector.load %arg4[%c0_10, %c0_11] : memref<128x384xbf16, #tpu.memory_space<vmem>>, vector<128x384xbf16>
    %c0_12 = arith.constant 0 : index
    %c0_13 = arith.constant 0 : index
    %13 = vector.load %arg6[%c0_12, %c0_13] : memref<1x128xf32, #tpu.memory_space<vmem>>, vector<1x128xf32>
    %14 = vector.shape_cast %13 : vector<1x128xf32> to vector<1x128xf32>
    %15 = vector.broadcast %14 : vector<1x128xf32> to vector<8x128xf32>
    %c0_14 = arith.constant 0 : index
    %c0_15 = arith.constant 0 : index
    %16 = vector.load %arg12[%c0_14, %c0_15] : memref<8x128xf32, #tpu.memory_space<vmem>>, vector<8x128xf32>
    %c0_i32_16 = arith.constant 0 : i32
    %17 = arith.index_cast %c0_i32_16 : i32 to index
    %c0_17 = arith.constant 0 : index
    %c0_18 = arith.constant 0 : index
    %18 = vector.load %arg13[%17, %c0_17, %c0_18] : memref<8x8x384xf32, #tpu.memory_space<vmem>>, vector<1x8x384xf32>
    %19 = vector.shape_cast %18 : vector<1x8x384xf32> to vector<8x384xf32>
    %20 = arith.truncf %16 : vector<8x128xf32> to vector<8x128xbf16>
    %cst_19 = arith.constant dense<0.000000e+00> : vector<8x384xf32>
    %21 = tpu.matmul %20, %12, %cst_19 {dimension_numbers = #tpu.dot_dimension_numbers<[1], [0], [0], [1], [0, 0, 1, 1], [], []>} : vector<8x128xbf16>, vector<128x384xbf16>, vector<8x384xf32> -> vector<8x384xf32>
    %22 = vector.extract_strided_slice %19 {offsets = [0, 0], sizes = [8, 128], strides = [1, 1]} : vector<8x384xf32> to vector<8x128xf32>
    %23 = vector.extract_strided_slice %21 {offsets = [0, 0], sizes = [8, 128], strides = [1, 1]} : vector<8x384xf32> to vector<8x128xf32>
    %24 = arith.addf %22, %23 : vector<8x128xf32>
    %25 = arith.negf %24 : vector<8x128xf32>
    %26 = math.exp %25 : vector<8x128xf32>
    %cst_20 = arith.constant 1.000000e+00 : f32
    %27 = vector.broadcast %cst_20 : f32 to vector<8x128xf32>
    %28 = arith.addf %27, %26 : vector<8x128xf32>
    %29 = arith.divf %27, %28 : vector<8x128xf32>
    %30 = vector.extract_strided_slice %19 {offsets = [0, 128], sizes = [8, 128], strides = [1, 1]} : vector<8x384xf32> to vector<8x128xf32>
    %31 = vector.extract_strided_slice %21 {offsets = [0, 128], sizes = [8, 128], strides = [1, 1]} : vector<8x384xf32> to vector<8x128xf32>
    %32 = arith.addf %30, %31 : vector<8x128xf32>
    %33 = arith.negf %32 : vector<8x128xf32>
    %34 = math.exp %33 : vector<8x128xf32>
    %cst_21 = arith.constant 1.000000e+00 : f32
    %35 = vector.broadcast %cst_21 : f32 to vector<8x128xf32>
    %36 = arith.addf %35, %34 : vector<8x128xf32>
    %37 = arith.divf %35, %36 : vector<8x128xf32>
    %38 = vector.extract_strided_slice %19 {offsets = [0, 256], sizes = [8, 128], strides = [1, 1]} : vector<8x384xf32> to vector<8x128xf32>
    %39 = vector.extract_strided_slice %21 {offsets = [0, 256], sizes = [8, 128], strides = [1, 1]} : vector<8x384xf32> to vector<8x128xf32>
    %40 = arith.addf %39, %15 : vector<8x128xf32>
    %41 = arith.mulf %29, %40 : vector<8x128xf32>
    %42 = arith.addf %38, %41 : vector<8x128xf32>
    %43 = math.tanh %42 : vector<8x128xf32>
    %cst_22 = arith.constant 1.000000e+00 : f32
    %44 = vector.broadcast %cst_22 : f32 to vector<8x128xf32>
    %45 = arith.subf %44, %37 : vector<8x128xf32>
    %46 = arith.mulf %45, %43 : vector<8x128xf32>
    %47 = arith.mulf %37, %16 : vector<8x128xf32>
    %48 = arith.addf %46, %47 : vector<8x128xf32>
    %c1_i32 = arith.constant 1 : i32
    %49 = arith.index_cast %c1_i32 : i32 to index
    %c0_23 = arith.constant 0 : index
    %c0_24 = arith.constant 0 : index
    %50 = vector.load %arg13[%49, %c0_23, %c0_24] : memref<8x8x384xf32, #tpu.memory_space<vmem>>, vector<1x8x384xf32>
    %51 = vector.shape_cast %50 : vector<1x8x384xf32> to vector<8x384xf32>
    %52 = arith.truncf %48 : vector<8x128xf32> to vector<8x128xbf16>
    %cst_25 = arith.constant dense<0.000000e+00> : vector<8x384xf32>
    %53 = tpu.matmul %52, %12, %cst_25 {dimension_numbers = #tpu.dot_dimension_numbers<[1], [0], [0], [1], [0, 0, 1, 1], [], []>} : vector<8x128xbf16>, vector<128x384xbf16>, vector<8x384xf32> -> vector<8x384xf32>
    %54 = vector.extract_strided_slice %51 {offsets = [0, 0], sizes = [8, 128], strides = [1, 1]} : vector<8x384xf32> to vector<8x128xf32>
    %55 = vector.extract_strided_slice %53 {offsets = [0, 0], sizes = [8, 128], strides = [1, 1]} : vector<8x384xf32> to vector<8x128xf32>
    %56 = arith.addf %54, %55 : vector<8x128xf32>
    %57 = arith.negf %56 : vector<8x128xf32>
    %58 = math.exp %57 : vector<8x128xf32>
    %cst_26 = arith.constant 1.000000e+00 : f32
    %59 = vector.broadcast %cst_26 : f32 to vector<8x128xf32>
    %60 = arith.addf %59, %58 : vector<8x128xf32>
    %61 = arith.divf %59, %60 : vector<8x128xf32>
    %62 = vector.extract_strided_slice %51 {offsets = [0, 128], sizes = [8, 128], strides = [1, 1]} : vector<8x384xf32> to vector<8x128xf32>
    %63 = vector.extract_strided_slice %53 {offsets = [0, 128], sizes = [8, 128], strides = [1, 1]} : vector<8x384xf32> to vector<8x128xf32>
    %64 = arith.addf %62, %63 : vector<8x128xf32>
    %65 = arith.negf %64 : vector<8x128xf32>
    %66 = math.exp %65 : vector<8x128xf32>
    %cst_27 = arith.constant 1.000000e+00 : f32
    %67 = vector.broadcast %cst_27 : f32 to vector<8x128xf32>
    %68 = arith.addf %67, %66 : vector<8x128xf32>
    %69 = arith.divf %67, %68 : vector<8x128xf32>
    %70 = vector.extract_strided_slice %51 {offsets = [0, 256], sizes = [8, 128], strides = [1, 1]} : vector<8x384xf32> to vector<8x128xf32>
    %71 = vector.extract_strided_slice %53 {offsets = [0, 256], sizes = [8, 128], strides = [1, 1]} : vector<8x384xf32> to vector<8x128xf32>
    %72 = arith.addf %71, %15 : vector<8x128xf32>
    %73 = arith.mulf %61, %72 : vector<8x128xf32>
    %74 = arith.addf %70, %73 : vector<8x128xf32>
    %75 = math.tanh %74 : vector<8x128xf32>
    %cst_28 = arith.constant 1.000000e+00 : f32
    %76 = vector.broadcast %cst_28 : f32 to vector<8x128xf32>
    %77 = arith.subf %76, %69 : vector<8x128xf32>
    %78 = arith.mulf %77, %75 : vector<8x128xf32>
    %79 = arith.mulf %69, %48 : vector<8x128xf32>
    %80 = arith.addf %78, %79 : vector<8x128xf32>
    %c2_i32 = arith.constant 2 : i32
    %81 = arith.index_cast %c2_i32 : i32 to index
    %c0_29 = arith.constant 0 : index
    %c0_30 = arith.constant 0 : index
    %82 = vector.load %arg13[%81, %c0_29, %c0_30] : memref<8x8x384xf32, #tpu.memory_space<vmem>>, vector<1x8x384xf32>
    %83 = vector.shape_cast %82 : vector<1x8x384xf32> to vector<8x384xf32>
    %84 = arith.truncf %80 : vector<8x128xf32> to vector<8x128xbf16>
    %cst_31 = arith.constant dense<0.000000e+00> : vector<8x384xf32>
    %85 = tpu.matmul %84, %12, %cst_31 {dimension_numbers = #tpu.dot_dimension_numbers<[1], [0], [0], [1], [0, 0, 1, 1], [], []>} : vector<8x128xbf16>, vector<128x384xbf16>, vector<8x384xf32> -> vector<8x384xf32>
    %86 = vector.extract_strided_slice %83 {offsets = [0, 0], sizes = [8, 128], strides = [1, 1]} : vector<8x384xf32> to vector<8x128xf32>
    %87 = vector.extract_strided_slice %85 {offsets = [0, 0], sizes = [8, 128], strides = [1, 1]} : vector<8x384xf32> to vector<8x128xf32>
    %88 = arith.addf %86, %87 : vector<8x128xf32>
    %89 = arith.negf %88 : vector<8x128xf32>
    %90 = math.exp %89 : vector<8x128xf32>
    %cst_32 = arith.constant 1.000000e+00 : f32
    %91 = vector.broadcast %cst_32 : f32 to vector<8x128xf32>
    %92 = arith.addf %91, %90 : vector<8x128xf32>
    %93 = arith.divf %91, %92 : vector<8x128xf32>
    %94 = vector.extract_strided_slice %83 {offsets = [0, 128], sizes = [8, 128], strides = [1, 1]} : vector<8x384xf32> to vector<8x128xf32>
    %95 = vector.extract_strided_slice %85 {offsets = [0, 128], sizes = [8, 128], strides = [1, 1]} : vector<8x384xf32> to vector<8x128xf32>
    %96 = arith.addf %94, %95 : vector<8x128xf32>
    %97 = arith.negf %96 : vector<8x128xf32>
    %98 = math.exp %97 : vector<8x128xf32>
    %cst_33 = arith.constant 1.000000e+00 : f32
    %99 = vector.broadcast %cst_33 : f32 to vector<8x128xf32>
    %100 = arith.addf %99, %98 : vector<8x128xf32>
    %101 = arith.divf %99, %100 : vector<8x128xf32>
    %102 = vector.extract_strided_slice %83 {offsets = [0, 256], sizes = [8, 128], strides = [1, 1]} : vector<8x384xf32> to vector<8x128xf32>
    %103 = vector.extract_strided_slice %85 {offsets = [0, 256], sizes = [8, 128], strides = [1, 1]} : vector<8x384xf32> to vector<8x128xf32>
    %104 = arith.addf %103, %15 : vector<8x128xf32>
    %105 = arith.mulf %93, %104 : vector<8x128xf32>
    %106 = arith.addf %102, %105 : vector<8x128xf32>
    %107 = math.tanh %106 : vector<8x128xf32>
    %cst_34 = arith.constant 1.000000e+00 : f32
    %108 = vector.broadcast %cst_34 : f32 to vector<8x128xf32>
    %109 = arith.subf %108, %101 : vector<8x128xf32>
    %110 = arith.mulf %109, %107 : vector<8x128xf32>
    %111 = arith.mulf %101, %80 : vector<8x128xf32>
    %112 = arith.addf %110, %111 : vector<8x128xf32>
    %c3_i32 = arith.constant 3 : i32
    %113 = arith.index_cast %c3_i32 : i32 to index
    %c0_35 = arith.constant 0 : index
    %c0_36 = arith.constant 0 : index
    %114 = vector.load %arg13[%113, %c0_35, %c0_36] : memref<8x8x384xf32, #tpu.memory_space<vmem>>, vector<1x8x384xf32>
    %115 = vector.shape_cast %114 : vector<1x8x384xf32> to vector<8x384xf32>
    %116 = arith.truncf %112 : vector<8x128xf32> to vector<8x128xbf16>
    %cst_37 = arith.constant dense<0.000000e+00> : vector<8x384xf32>
    %117 = tpu.matmul %116, %12, %cst_37 {dimension_numbers = #tpu.dot_dimension_numbers<[1], [0], [0], [1], [0, 0, 1, 1], [], []>} : vector<8x128xbf16>, vector<128x384xbf16>, vector<8x384xf32> -> vector<8x384xf32>
    %118 = vector.extract_strided_slice %115 {offsets = [0, 0], sizes = [8, 128], strides = [1, 1]} : vector<8x384xf32> to vector<8x128xf32>
    %119 = vector.extract_strided_slice %117 {offsets = [0, 0], sizes = [8, 128], strides = [1, 1]} : vector<8x384xf32> to vector<8x128xf32>
    %120 = arith.addf %118, %119 : vector<8x128xf32>
    %121 = arith.negf %120 : vector<8x128xf32>
    %122 = math.exp %121 : vector<8x128xf32>
    %cst_38 = arith.constant 1.000000e+00 : f32
    %123 = vector.broadcast %cst_38 : f32 to vector<8x128xf32>
    %124 = arith.addf %123, %122 : vector<8x128xf32>
    %125 = arith.divf %123, %124 : vector<8x128xf32>
    %126 = vector.extract_strided_slice %115 {offsets = [0, 128], sizes = [8, 128], strides = [1, 1]} : vector<8x384xf32> to vector<8x128xf32>
    %127 = vector.extract_strided_slice %117 {offsets = [0, 128], sizes = [8, 128], strides = [1, 1]} : vector<8x384xf32> to vector<8x128xf32>
    %128 = arith.addf %126, %127 : vector<8x128xf32>
    %129 = arith.negf %128 : vector<8x128xf32>
    %130 = math.exp %129 : vector<8x128xf32>
    %cst_39 = arith.constant 1.000000e+00 : f32
    %131 = vector.broadcast %cst_39 : f32 to vector<8x128xf32>
    %132 = arith.addf %131, %130 : vector<8x128xf32>
    %133 = arith.divf %131, %132 : vector<8x128xf32>
    %134 = vector.extract_strided_slice %115 {offsets = [0, 256], sizes = [8, 128], strides = [1, 1]} : vector<8x384xf32> to vector<8x128xf32>
    %135 = vector.extract_strided_slice %117 {offsets = [0, 256], sizes = [8, 128], strides = [1, 1]} : vector<8x384xf32> to vector<8x128xf32>
    %136 = arith.addf %135, %15 : vector<8x128xf32>
    %137 = arith.mulf %125, %136 : vector<8x128xf32>
    %138 = arith.addf %134, %137 : vector<8x128xf32>
    %139 = math.tanh %138 : vector<8x128xf32>
    %cst_40 = arith.constant 1.000000e+00 : f32
    %140 = vector.broadcast %cst_40 : f32 to vector<8x128xf32>
    %141 = arith.subf %140, %133 : vector<8x128xf32>
    %142 = arith.mulf %141, %139 : vector<8x128xf32>
    %143 = arith.mulf %133, %112 : vector<8x128xf32>
    %144 = arith.addf %142, %143 : vector<8x128xf32>
    %c4_i32 = arith.constant 4 : i32
    %145 = arith.index_cast %c4_i32 : i32 to index
    %c0_41 = arith.constant 0 : index
    %c0_42 = arith.constant 0 : index
    %146 = vector.load %arg13[%145, %c0_41, %c0_42] : memref<8x8x384xf32, #tpu.memory_space<vmem>>, vector<1x8x384xf32>
    %147 = vector.shape_cast %146 : vector<1x8x384xf32> to vector<8x384xf32>
    %148 = arith.truncf %144 : vector<8x128xf32> to vector<8x128xbf16>
    %cst_43 = arith.constant dense<0.000000e+00> : vector<8x384xf32>
    %149 = tpu.matmul %148, %12, %cst_43 {dimension_numbers = #tpu.dot_dimension_numbers<[1], [0], [0], [1], [0, 0, 1, 1], [], []>} : vector<8x128xbf16>, vector<128x384xbf16>, vector<8x384xf32> -> vector<8x384xf32>
    %150 = vector.extract_strided_slice %147 {offsets = [0, 0], sizes = [8, 128], strides = [1, 1]} : vector<8x384xf32> to vector<8x128xf32>
    %151 = vector.extract_strided_slice %149 {offsets = [0, 0], sizes = [8, 128], strides = [1, 1]} : vector<8x384xf32> to vector<8x128xf32>
    %152 = arith.addf %150, %151 : vector<8x128xf32>
    %153 = arith.negf %152 : vector<8x128xf32>
    %154 = math.exp %153 : vector<8x128xf32>
    %cst_44 = arith.constant 1.000000e+00 : f32
    %155 = vector.broadcast %cst_44 : f32 to vector<8x128xf32>
    %156 = arith.addf %155, %154 : vector<8x128xf32>
    %157 = arith.divf %155, %156 : vector<8x128xf32>
    %158 = vector.extract_strided_slice %147 {offsets = [0, 128], sizes = [8, 128], strides = [1, 1]} : vector<8x384xf32> to vector<8x128xf32>
    %159 = vector.extract_strided_slice %149 {offsets = [0, 128], sizes = [8, 128], strides = [1, 1]} : vector<8x384xf32> to vector<8x128xf32>
    %160 = arith.addf %158, %159 : vector<8x128xf32>
    %161 = arith.negf %160 : vector<8x128xf32>
    %162 = math.exp %161 : vector<8x128xf32>
    %cst_45 = arith.constant 1.000000e+00 : f32
    %163 = vector.broadcast %cst_45 : f32 to vector<8x128xf32>
    %164 = arith.addf %163, %162 : vector<8x128xf32>
    %165 = arith.divf %163, %164 : vector<8x128xf32>
    %166 = vector.extract_strided_slice %147 {offsets = [0, 256], sizes = [8, 128], strides = [1, 1]} : vector<8x384xf32> to vector<8x128xf32>
    %167 = vector.extract_strided_slice %149 {offsets = [0, 256], sizes = [8, 128], strides = [1, 1]} : vector<8x384xf32> to vector<8x128xf32>
    %168 = arith.addf %167, %15 : vector<8x128xf32>
    %169 = arith.mulf %157, %168 : vector<8x128xf32>
    %170 = arith.addf %166, %169 : vector<8x128xf32>
    %171 = math.tanh %170 : vector<8x128xf32>
    %cst_46 = arith.constant 1.000000e+00 : f32
    %172 = vector.broadcast %cst_46 : f32 to vector<8x128xf32>
    %173 = arith.subf %172, %165 : vector<8x128xf32>
    %174 = arith.mulf %173, %171 : vector<8x128xf32>
    %175 = arith.mulf %165, %144 : vector<8x128xf32>
    %176 = arith.addf %174, %175 : vector<8x128xf32>
    %c5_i32 = arith.constant 5 : i32
    %177 = arith.index_cast %c5_i32 : i32 to index
    %c0_47 = arith.constant 0 : index
    %c0_48 = arith.constant 0 : index
    %178 = vector.load %arg13[%177, %c0_47, %c0_48] : memref<8x8x384xf32, #tpu.memory_space<vmem>>, vector<1x8x384xf32>
    %179 = vector.shape_cast %178 : vector<1x8x384xf32> to vector<8x384xf32>
    %180 = arith.truncf %176 : vector<8x128xf32> to vector<8x128xbf16>
    %cst_49 = arith.constant dense<0.000000e+00> : vector<8x384xf32>
    %181 = tpu.matmul %180, %12, %cst_49 {dimension_numbers = #tpu.dot_dimension_numbers<[1], [0], [0], [1], [0, 0, 1, 1], [], []>} : vector<8x128xbf16>, vector<128x384xbf16>, vector<8x384xf32> -> vector<8x384xf32>
    %182 = vector.extract_strided_slice %179 {offsets = [0, 0], sizes = [8, 128], strides = [1, 1]} : vector<8x384xf32> to vector<8x128xf32>
    %183 = vector.extract_strided_slice %181 {offsets = [0, 0], sizes = [8, 128], strides = [1, 1]} : vector<8x384xf32> to vector<8x128xf32>
    %184 = arith.addf %182, %183 : vector<8x128xf32>
    %185 = arith.negf %184 : vector<8x128xf32>
    %186 = math.exp %185 : vector<8x128xf32>
    %cst_50 = arith.constant 1.000000e+00 : f32
    %187 = vector.broadcast %cst_50 : f32 to vector<8x128xf32>
    %188 = arith.addf %187, %186 : vector<8x128xf32>
    %189 = arith.divf %187, %188 : vector<8x128xf32>
    %190 = vector.extract_strided_slice %179 {offsets = [0, 128], sizes = [8, 128], strides = [1, 1]} : vector<8x384xf32> to vector<8x128xf32>
    %191 = vector.extract_strided_slice %181 {offsets = [0, 128], sizes = [8, 128], strides = [1, 1]} : vector<8x384xf32> to vector<8x128xf32>
    %192 = arith.addf %190, %191 : vector<8x128xf32>
    %193 = arith.negf %192 : vector<8x128xf32>
    %194 = math.exp %193 : vector<8x128xf32>
    %cst_51 = arith.constant 1.000000e+00 : f32
    %195 = vector.broadcast %cst_51 : f32 to vector<8x128xf32>
    %196 = arith.addf %195, %194 : vector<8x128xf32>
    %197 = arith.divf %195, %196 : vector<8x128xf32>
    %198 = vector.extract_strided_slice %179 {offsets = [0, 256], sizes = [8, 128], strides = [1, 1]} : vector<8x384xf32> to vector<8x128xf32>
    %199 = vector.extract_strided_slice %181 {offsets = [0, 256], sizes = [8, 128], strides = [1, 1]} : vector<8x384xf32> to vector<8x128xf32>
    %200 = arith.addf %199, %15 : vector<8x128xf32>
    %201 = arith.mulf %189, %200 : vector<8x128xf32>
    %202 = arith.addf %198, %201 : vector<8x128xf32>
    %203 = math.tanh %202 : vector<8x128xf32>
    %cst_52 = arith.constant 1.000000e+00 : f32
    %204 = vector.broadcast %cst_52 : f32 to vector<8x128xf32>
    %205 = arith.subf %204, %197 : vector<8x128xf32>
    %206 = arith.mulf %205, %203 : vector<8x128xf32>
    %207 = arith.mulf %197, %176 : vector<8x128xf32>
    %208 = arith.addf %206, %207 : vector<8x128xf32>
    %c6_i32 = arith.constant 6 : i32
    %209 = arith.index_cast %c6_i32 : i32 to index
    %c0_53 = arith.constant 0 : index
    %c0_54 = arith.constant 0 : index
    %210 = vector.load %arg13[%209, %c0_53, %c0_54] : memref<8x8x384xf32, #tpu.memory_space<vmem>>, vector<1x8x384xf32>
    %211 = vector.shape_cast %210 : vector<1x8x384xf32> to vector<8x384xf32>
    %212 = arith.truncf %208 : vector<8x128xf32> to vector<8x128xbf16>
    %cst_55 = arith.constant dense<0.000000e+00> : vector<8x384xf32>
    %213 = tpu.matmul %212, %12, %cst_55 {dimension_numbers = #tpu.dot_dimension_numbers<[1], [0], [0], [1], [0, 0, 1, 1], [], []>} : vector<8x128xbf16>, vector<128x384xbf16>, vector<8x384xf32> -> vector<8x384xf32>
    %214 = vector.extract_strided_slice %211 {offsets = [0, 0], sizes = [8, 128], strides = [1, 1]} : vector<8x384xf32> to vector<8x128xf32>
    %215 = vector.extract_strided_slice %213 {offsets = [0, 0], sizes = [8, 128], strides = [1, 1]} : vector<8x384xf32> to vector<8x128xf32>
    %216 = arith.addf %214, %215 : vector<8x128xf32>
    %217 = arith.negf %216 : vector<8x128xf32>
    %218 = math.exp %217 : vector<8x128xf32>
    %cst_56 = arith.constant 1.000000e+00 : f32
    %219 = vector.broadcast %cst_56 : f32 to vector<8x128xf32>
    %220 = arith.addf %219, %218 : vector<8x128xf32>
    %221 = arith.divf %219, %220 : vector<8x128xf32>
    %222 = vector.extract_strided_slice %211 {offsets = [0, 128], sizes = [8, 128], strides = [1, 1]} : vector<8x384xf32> to vector<8x128xf32>
    %223 = vector.extract_strided_slice %213 {offsets = [0, 128], sizes = [8, 128], strides = [1, 1]} : vector<8x384xf32> to vector<8x128xf32>
    %224 = arith.addf %222, %223 : vector<8x128xf32>
    %225 = arith.negf %224 : vector<8x128xf32>
    %226 = math.exp %225 : vector<8x128xf32>
    %cst_57 = arith.constant 1.000000e+00 : f32
    %227 = vector.broadcast %cst_57 : f32 to vector<8x128xf32>
    %228 = arith.addf %227, %226 : vector<8x128xf32>
    %229 = arith.divf %227, %228 : vector<8x128xf32>
    %230 = vector.extract_strided_slice %211 {offsets = [0, 256], sizes = [8, 128], strides = [1, 1]} : vector<8x384xf32> to vector<8x128xf32>
    %231 = vector.extract_strided_slice %213 {offsets = [0, 256], sizes = [8, 128], strides = [1, 1]} : vector<8x384xf32> to vector<8x128xf32>
    %232 = arith.addf %231, %15 : vector<8x128xf32>
    %233 = arith.mulf %221, %232 : vector<8x128xf32>
    %234 = arith.addf %230, %233 : vector<8x128xf32>
    %235 = math.tanh %234 : vector<8x128xf32>
    %cst_58 = arith.constant 1.000000e+00 : f32
    %236 = vector.broadcast %cst_58 : f32 to vector<8x128xf32>
    %237 = arith.subf %236, %229 : vector<8x128xf32>
    %238 = arith.mulf %237, %235 : vector<8x128xf32>
    %239 = arith.mulf %229, %208 : vector<8x128xf32>
    %240 = arith.addf %238, %239 : vector<8x128xf32>
    %c7_i32 = arith.constant 7 : i32
    %241 = arith.index_cast %c7_i32 : i32 to index
    %c0_59 = arith.constant 0 : index
    %c0_60 = arith.constant 0 : index
    %242 = vector.load %arg13[%241, %c0_59, %c0_60] : memref<8x8x384xf32, #tpu.memory_space<vmem>>, vector<1x8x384xf32>
    %243 = vector.shape_cast %242 : vector<1x8x384xf32> to vector<8x384xf32>
    %244 = arith.truncf %240 : vector<8x128xf32> to vector<8x128xbf16>
    %cst_61 = arith.constant dense<0.000000e+00> : vector<8x384xf32>
    %245 = tpu.matmul %244, %12, %cst_61 {dimension_numbers = #tpu.dot_dimension_numbers<[1], [0], [0], [1], [0, 0, 1, 1], [], []>} : vector<8x128xbf16>, vector<128x384xbf16>, vector<8x384xf32> -> vector<8x384xf32>
    %246 = vector.extract_strided_slice %243 {offsets = [0, 0], sizes = [8, 128], strides = [1, 1]} : vector<8x384xf32> to vector<8x128xf32>
    %247 = vector.extract_strided_slice %245 {offsets = [0, 0], sizes = [8, 128], strides = [1, 1]} : vector<8x384xf32> to vector<8x128xf32>
    %248 = arith.addf %246, %247 : vector<8x128xf32>
    %249 = arith.negf %248 : vector<8x128xf32>
    %250 = math.exp %249 : vector<8x128xf32>
    %cst_62 = arith.constant 1.000000e+00 : f32
    %251 = vector.broadcast %cst_62 : f32 to vector<8x128xf32>
    %252 = arith.addf %251, %250 : vector<8x128xf32>
    %253 = arith.divf %251, %252 : vector<8x128xf32>
    %254 = vector.extract_strided_slice %243 {offsets = [0, 128], sizes = [8, 128], strides = [1, 1]} : vector<8x384xf32> to vector<8x128xf32>
    %255 = vector.extract_strided_slice %245 {offsets = [0, 128], sizes = [8, 128], strides = [1, 1]} : vector<8x384xf32> to vector<8x128xf32>
    %256 = arith.addf %254, %255 : vector<8x128xf32>
    %257 = arith.negf %256 : vector<8x128xf32>
    %258 = math.exp %257 : vector<8x128xf32>
    %cst_63 = arith.constant 1.000000e+00 : f32
    %259 = vector.broadcast %cst_63 : f32 to vector<8x128xf32>
    %260 = arith.addf %259, %258 : vector<8x128xf32>
    %261 = arith.divf %259, %260 : vector<8x128xf32>
    %262 = vector.extract_strided_slice %243 {offsets = [0, 256], sizes = [8, 128], strides = [1, 1]} : vector<8x384xf32> to vector<8x128xf32>
    %263 = vector.extract_strided_slice %245 {offsets = [0, 256], sizes = [8, 128], strides = [1, 1]} : vector<8x384xf32> to vector<8x128xf32>
    %264 = arith.addf %263, %15 : vector<8x128xf32>
    %265 = arith.mulf %253, %264 : vector<8x128xf32>
    %266 = arith.addf %262, %265 : vector<8x128xf32>
    %267 = math.tanh %266 : vector<8x128xf32>
    %cst_64 = arith.constant 1.000000e+00 : f32
    %268 = vector.broadcast %cst_64 : f32 to vector<8x128xf32>
    %269 = arith.subf %268, %261 : vector<8x128xf32>
    %270 = arith.mulf %269, %267 : vector<8x128xf32>
    %271 = arith.mulf %261, %240 : vector<8x128xf32>
    %272 = arith.addf %270, %271 : vector<8x128xf32>
    %c8_i32 = arith.constant 8 : i32
    %c0_65 = arith.constant 0 : index
    %c0_66 = arith.constant 0 : index
    %273 = vector.load %arg12[%c0_65, %c0_66] : memref<8x128xf32, #tpu.memory_space<vmem>>, vector<8x128xf32>
    tpu.vector_store %arg12[%c0_65, %c0_66], %272 {strides = array<i32>} : memref<8x128xf32, #tpu.memory_space<vmem>>, vector<8x128xf32>,
    %c0_i32_67 = arith.constant 0 : i32
    %274 = arith.cmpi eq, %arg0, %c0_i32_67 : i32
    %275 = arith.extui %274 : i1 to i32
    %c0_i32_68 = arith.constant 0 : i32
    %276 = arith.cmpi ne, %275, %c0_i32_68 : i32
    scf.if %276 {
      %277 = arith.truncf %272 : vector<8x128xf32> to vector<8x128xbf16>
      %c0_69 = arith.constant 0 : index
      %c0_70 = arith.constant 0 : index
      %278 = vector.load %arg7[%c0_69, %c0_70] : memref<128x128xbf16, #tpu.memory_space<vmem>>, vector<128x128xbf16>
      %cst_71 = arith.constant dense<0.000000e+00> : vector<8x128xf32>
      %279 = tpu.matmul %277, %278, %cst_71 {dimension_numbers = #tpu.dot_dimension_numbers<[1], [0], [0], [1], [0, 0, 1, 1], [], []>} : vector<8x128xbf16>, vector<128x128xbf16>, vector<8x128xf32> -> vector<8x128xf32>
      %c0_72 = arith.constant 0 : index
      %c0_73 = arith.constant 0 : index
      %280 = vector.load %arg8[%c0_72, %c0_73] : memref<1x128xf32, #tpu.memory_space<vmem>>, vector<1x128xf32>
      %281 = vector.broadcast %280 : vector<1x128xf32> to vector<8x128xf32>
      %282 = arith.addf %279, %281 : vector<8x128xf32>
      %cst_74 = arith.constant 0.000000e+00 : f32
      %283 = vector.broadcast %cst_74 : f32 to vector<8x128xf32>
      %284 = arith.maximumf %282, %283 : vector<8x128xf32>
      %285 = arith.truncf %284 : vector<8x128xf32> to vector<8x128xbf16>
      %c0_75 = arith.constant 0 : index
      %c0_76 = arith.constant 0 : index
      %286 = vector.load %arg9[%c0_75, %c0_76] : memref<128x128xbf16, #tpu.memory_space<vmem>>, vector<128x128xbf16>
      %cst_77 = arith.constant dense<0.000000e+00> : vector<8x128xf32>
      %287 = tpu.matmul %285, %286, %cst_77 {dimension_numbers = #tpu.dot_dimension_numbers<[1], [0], [0], [1], [0, 0, 1, 1], [], []>} : vector<8x128xbf16>, vector<128x128xbf16>, vector<8x128xf32> -> vector<8x128xf32>
      %c0_78 = arith.constant 0 : index
      %c0_79 = arith.constant 0 : index
      %288 = vector.load %arg10[%c0_78, %c0_79] : memref<1x128xf32, #tpu.memory_space<vmem>>, vector<1x128xf32>
      %289 = vector.broadcast %288 : vector<1x128xf32> to vector<8x128xf32>
      %290 = arith.addf %287, %289 : vector<8x128xf32>
      %c0_80 = arith.constant 0 : index
      %c0_81 = arith.constant 0 : index
      %291 = vector.load %arg11[%c0_80, %c0_81] : memref<8x128xf32, #tpu.memory_space<vmem>>, vector<8x128xf32>
      tpu.vector_store %arg11[%c0_80, %c0_81], %290 {strides = array<i32>} : memref<8x128xf32, #tpu.memory_space<vmem>>, vector<8x128xf32>,
    } else {
    }
    return
  }
  func.func @transform_0(%arg0: i32) -> (i32, i32) {
    %c0_i32 = arith.constant 0 : i32
    %c0_i32_0 = arith.constant 0 : i32
    %c0_i32_1 = arith.constant 0 : i32
    return %c0_i32, %c0_i32_0 : i32, i32
  }
  func.func @transform_1(%arg0: i32) -> (i32, i32, i32) {
    %c0_i32 = arith.constant 0 : i32
    %c0_i32_0 = arith.constant 0 : i32
    %c0_i32_1 = arith.constant 0 : i32
    return %arg0, %c0_i32, %c0_i32_0 : i32, i32, i32
  }
  func.func @transform_2(%arg0: i32) -> (i32, i32) {
    %c0_i32 = arith.constant 0 : i32
    %c0_i32_0 = arith.constant 0 : i32
    %c0_i32_1 = arith.constant 0 : i32
    return %c0_i32, %c0_i32_0 : i32, i32
  }
  func.func @transform_3(%arg0: i32) -> (i32, i32) {
    %c0_i32 = arith.constant 0 : i32
    %c0_i32_0 = arith.constant 0 : i32
    %c0_i32_1 = arith.constant 0 : i32
    return %c0_i32, %c0_i32_0 : i32, i32
  }
  func.func @transform_4(%arg0: i32) -> (i32, i32) {
    %c0_i32 = arith.constant 0 : i32
    %c0_i32_0 = arith.constant 0 : i32
    %c0_i32_1 = arith.constant 0 : i32
    return %c0_i32, %c0_i32_0 : i32, i32
  }
  func.func @transform_5(%arg0: i32) -> (i32, i32) {
    %c0_i32 = arith.constant 0 : i32
    %c0_i32_0 = arith.constant 0 : i32
    %c0_i32_1 = arith.constant 0 : i32
    return %c0_i32, %c0_i32_0 : i32, i32
  }
  func.func @transform_6(%arg0: i32) -> (i32, i32) {
    %c0_i32 = arith.constant 0 : i32
    %c0_i32_0 = arith.constant 0 : i32
    %c0_i32_1 = arith.constant 0 : i32
    return %c0_i32, %c0_i32_0 : i32, i32
  }
  func.func @transform_7(%arg0: i32) -> (i32, i32) {
    %c0_i32 = arith.constant 0 : i32
    %c0_i32_0 = arith.constant 0 : i32
    %c0_i32_1 = arith.constant 0 : i32
    return %c0_i32, %c0_i32_0 : i32, i32
  }
  func.func @transform_8(%arg0: i32) -> (i32, i32) {
    %c0_i32 = arith.constant 0 : i32
    %c0_i32_0 = arith.constant 0 : i32
    %c0_i32_1 = arith.constant 0 : i32
    return %c0_i32, %c0_i32_0 : i32, i32
  }
  func.func @transform_9(%arg0: i32) -> (i32, i32) {
    %c0_i32 = arith.constant 0 : i32
    %c0_i32_0 = arith.constant 0 : i32
    %c0_i32_1 = arith.constant 0 : i32
    return %c0_i32, %c0_i32_0 : i32, i32
  }
  func.func @transform_10(%arg0: i32) -> (i32, i32) {
    %c0_i32 = arith.constant 0 : i32
    %c0_i32_0 = arith.constant 0 : i32
    %c0_i32_1 = arith.constant 0 : i32
    return %c0_i32, %c0_i32_0 : i32, i32
  }
}

</mosaic_0001>

<llo_original>
// kernel: tpu_custom_call.1
$region0: #{tpu_custom_call.1}
  #allocation0 [shape = 'u32[]', space=smem, size = 0x4, offset = 0x4, fixed_abs, tag = 'smem constant byte address 0x4 - core index']
  #allocation1 [shape = 'u32[144,128]{1,0:T(1,128)}', space=vmem, size = 0x12000, scoped, tag = 'internal scratch']
  #allocation2 [shape = 'f32[8,128]{1,0:T(8,128)}', space=vmem, size = 0x1000, scoped, tag = 'scratch operand']
  #allocation3 [shape = 'f32[8,8,384]{2,1,0:T(8,128)}', space=vmem, size = 0x18000, scoped, tag = 'scratch operand']
  %s0 = inlined_call_operand.hbm [shape: f32[8,128], index: 0, kind: input, shape index: {}]
  %s1 = inlined_call_operand.hbm [shape: bf16[8,8,16], index: 1, kind: input, shape index: {}]
  %s2 = inlined_call_operand.hbm [shape: bf16[16,384], index: 2, kind: input, shape index: {}]
  %s3 = inlined_call_operand.hbm [shape: bf16[128,384], index: 3, kind: input, shape index: {}]
  %s4 = inlined_call_operand.vmem [shape: f32[1,384], index: 4, kind: input, shape index: {}]
  %s5 = inlined_call_operand.vmem [shape: f32[1,128], index: 5, kind: input, shape index: {}]
  %s6 = inlined_call_operand.hbm [shape: bf16[128,128], index: 6, kind: input, shape index: {}]
  %s7 = inlined_call_operand.vmem [shape: f32[1,128], index: 7, kind: input, shape index: {}]
  %s8 = inlined_call_operand.hbm [shape: bf16[128,128], index: 8, kind: input, shape index: {}]
  %s9 = inlined_call_operand.vmem [shape: f32[1,128], index: 9, kind: input, shape index: {}]
  %s10 = inlined_call_operand.hbm [shape: f32[8,128], index: 10, kind: output, shape index: {}]
  %s11 = sld [smem:[#allocation0]]
  $region82: #{tpu_custom_call.1} parent=0
    _
  %s13 = ssub.s32 1, %s11
  %s14 = scalar_select 0, %s13, %s11
  $region1: #{tpu_custom_call.1} parent=0
    #allocation4 [shape = 'u8[4096]{0}', space=vmem, size = 0x1000, scoped, tag = 'input window, operand 0, single buffered']
    #allocation5 [shape = 's32[1]{0}', space=sflag, size = 0x4, scoped, tag = 'scoped memory for tpu_custom_call.1']
    #allocation6 [shape = 's32[1]{0}', space=sflag, size = 0x4, scoped, tag = 'scoped memory for tpu_custom_call.1']
    #allocation7 [shape = 'u8[16384]{0}', space=vmem, size = 0x4000, scoped, tag = 'input window, operand 1, single buffered']
    #allocation8 [shape = 's32[1]{0}', space=sflag, size = 0x4, scoped, tag = 'scoped memory for tpu_custom_call.1']
    #allocation9 [shape = 'u8[12288]{0}', space=vmem, size = 0x3000, scoped, tag = 'input window, operand 2, single buffered']
    #allocation10 [shape = 'u8[98304]{0}', space=vmem, size = 0x18000, scoped, tag = 'input window, operand 3, single buffered']
    #allocation11 [shape = 's32[1]{0}', space=sflag, size = 0x4, scoped, tag = 'scoped memory for tpu_custom_call.1']
    #allocation12 [shape = 'u8[32768]{0}', space=vmem, size = 0x8000, scoped, tag = 'input window, operand 6, single buffered']
    #allocation13 [shape = 'u8[32768]{0}', space=vmem, size = 0x8000, scoped, tag = 'input window, operand 8, single buffered']
    #allocation14 [shape = 's32[1]{0}', space=sflag, size = 0x4, scoped, tag = 'scoped memory for tpu_custom_call.1']
    #allocation15 [shape = 'u8[4096]{0}', space=vmem, size = 0x1000, scoped, tag = 'output window, operand 0, single buffered']
    %15 = vsyncpa [#allocation5], 0
    %16 = vsyncpa [#allocation8], 0
    %17 = vsyncpa [#allocation11], 0
    %18 = vsyncpa [#allocation14], 0
    %19 = vsyncpa [#allocation6], 0
    // Predicated region
    $region2: #{tpu_custom_call.1} parent=1 // pred_check
      _
    $region3: #{tpu_custom_call.1} parent=1 // pred_check_branch
      %21 = sbr.rel (0) target = $region5
    $region4: #{tpu_custom_call.1} parent=1 // pred_region
      %s23 = ssub.s32 128, 128
      %24 = vsyncadd [#allocation5], %s23
      %s26 = sshll.u32 [#allocation4], 4
      %s27 = int_to_ptr.vmem [resolvable:$true] %s26
      %29 = dma.hbm_to_vmem [thread:$0]  %s0, 128, %s27, [#allocation5]
    $region5: #{tpu_custom_call.1} parent=1 // pred_fallthru
      _
    // Predicated region
    $region6: #{tpu_custom_call.1} parent=1 // pred_check
      _
    $region7: #{tpu_custom_call.1} parent=1 // pred_check_branch
      %31 = sbr.rel (0) target = $region9
    $region8: #{tpu_custom_call.1} parent=1 // pred_region
      %s33 = ssub.s32 512, 512
      %34 = vsyncadd [#allocation8], %s33
      %s35 = sshll.u32 [#allocation7], 4
      %s36 = int_to_ptr.vmem [resolvable:$true] %s35
      %41 = dma.hbm_to_vmem [thread:$0]  %s1, 512, %s36, [#allocation8], 64, 64, 4
    $region9: #{tpu_custom_call.1} parent=1 // pred_fallthru
      _
    // Predicated region
    $region10: #{tpu_custom_call.1} parent=1 // pred_check
      _
    $region11: #{tpu_custom_call.1} parent=1 // pred_check_branch
      %43 = sbr.rel (0) target = $region13
    $region12: #{tpu_custom_call.1} parent=1 // pred_region
      %s45 = ssub.s32 384, 384
      %46 = vsyncadd [#allocation8], %s45
      %s47 = sshll.u32 [#allocation9], 4
      %s48 = int_to_ptr.vmem [resolvable:$true] %s47
      %53 = dma.hbm_to_vmem [thread:$0]  %s2, 384, %s48, [#allocation8], 192, 192, 12
    $region13: #{tpu_custom_call.1} parent=1 // pred_fallthru
      _
    // Predicated region
    $region14: #{tpu_custom_call.1} parent=1 // pred_check
      _
    $region15: #{tpu_custom_call.1} parent=1 // pred_check_branch
      %55 = sbr.rel (0) target = $region17
    $region16: #{tpu_custom_call.1} parent=1 // pred_region
      %s57 = ssub.s32 3072, 3072
      %58 = vsyncadd [#allocation11], %s57
      %s59 = sshll.u32 [#allocation10], 4
      %s60 = int_to_ptr.vmem [resolvable:$true] %s59
      %65 = dma.hbm_to_vmem [thread:$0]  %s3, 3072, %s60, [#allocation11], 192, 192, 12
    $region17: #{tpu_custom_call.1} parent=1 // pred_fallthru
      _
    // Predicated region
    $region18: #{tpu_custom_call.1} parent=1 // pred_check
      _
    $region19: #{tpu_custom_call.1} parent=1 // pred_check_branch
      %67 = sbr.rel (0) target = $region21
    $region20: #{tpu_custom_call.1} parent=1 // pred_region
      _
    $region21: #{tpu_custom_call.1} parent=1 // pred_fallthru
      _
    // Predicated region
    $region22: #{tpu_custom_call.1} parent=1 // pred_check
      _
    $region23: #{tpu_custom_call.1} parent=1 // pred_check_branch
      %69 = sbr.rel (0) target = $region25
    $region24: #{tpu_custom_call.1} parent=1 // pred_region
      _
    $region25: #{tpu_custom_call.1} parent=1 // pred_fallthru
      _
    // Predicated region
    $region26: #{tpu_custom_call.1} parent=1 // pred_check
      _
    $region27: #{tpu_custom_call.1} parent=1 // pred_check_branch
      %71 = sbr.rel (0) target = $region29
    $region28: #{tpu_custom_call.1} parent=1 // pred_region
      %s73 = ssub.s32 1024, 1024
      %74 = vsyncadd [#allocation11], %s73
      %s75 = sshll.u32 [#allocation12], 4
      %s76 = int_to_ptr.vmem [resolvable:$true] %s75
      %81 = dma.hbm_to_vmem [thread:$0]  %s6, 1024, %s76, [#allocation11], 64, 64, 4
    $region29: #{tpu_custom_call.1} parent=1 // pred_fallthru
      _
    // Predicated region
    $region30: #{tpu_custom_call.1} parent=1 // pred_check
      _
    $region31: #{tpu_custom_call.1} parent=1 // pred_check_branch
      %83 = sbr.rel (0) target = $region33
    $region32: #{tpu_custom_call.1} parent=1 // pred_region
      _
    $region33: #{tpu_custom_call.1} parent=1 // pred_fallthru
      _
    // Predicated region
    $region34: #{tpu_custom_call.1} parent=1 // pred_check
      _
    $region35: #{tpu_custom_call.1} parent=1 // pred_check_branch
      %85 = sbr.rel (0) target = $region37
    $region36: #{tpu_custom_call.1} parent=1 // pred_region
      %s87 = ssub.s32 1024, 1024
      %88 = vsyncadd [#allocation14], %s87
      %s89 = sshll.u32 [#allocation13], 4
      %s90 = int_to_ptr.vmem [resolvable:$true] %s89
      %95 = dma.hbm_to_vmem [thread:$0]  %s8, 1024, %s90, [#allocation14], 64, 64, 4
    $region37: #{tpu_custom_call.1} parent=1 // pred_fallthru
      _
    // Predicated region
    $region38: #{tpu_custom_call.1} parent=1 // pred_check
      _
    $region39: #{tpu_custom_call.1} parent=1 // pred_check_branch
      %97 = sbr.rel (0) target = $region41
    $region40: #{tpu_custom_call.1} parent=1 // pred_region
      _
    $region41: #{tpu_custom_call.1} parent=1 // pred_fallthru
      _
    // Predicated region
    $region42: #{tpu_custom_call.1} parent=1 // pred_check
      _
    $region43: #{tpu_custom_call.1} parent=1 // pred_check_branch
      %99 = sbr.rel (0) target = $region45
    $region44: #{tpu_custom_call.1} parent=1 // pred_region
      %100 = dma.done [#allocation5], 128
    $region45: #{tpu_custom_call.1} parent=1 // pred_fallthru
      _
    // Predicated region
    $region46: #{tpu_custom_call.1} parent=1 // pred_check
      _
    $region47: #{tpu_custom_call.1} parent=1 // pred_check_branch
      %102 = sbr.rel (0) target = $region49
    $region48: #{tpu_custom_call.1} parent=1 // pred_region
      %103 = dma.done [#allocation8], 512
    $region49: #{tpu_custom_call.1} parent=1 // pred_fallthru
      _
    // Predicated region
    $region50: #{tpu_custom_call.1} parent=1 // pred_check
      _
    $region51: #{tpu_custom_call.1} parent=1 // pred_check_branch
      %105 = sbr.rel (0) target = $region53
    $region52: #{tpu_custom_call.1} parent=1 // pred_region
      %106 = dma.done [#allocation8], 384
    $region53: #{tpu_custom_call.1} parent=1 // pred_fallthru
      _
    // Predicated region
    $region54: #{tpu_custom_call.1} parent=1 // pred_check
      _
    $region55: #{tpu_custom_call.1} parent=1 // pred_check_branch
      %108 = sbr.rel (0) target = $region57
    $region56: #{tpu_custom_call.1} parent=1 // pred_region
      %109 = dma.done [#allocation11], 3072
    $region57: #{tpu_custom_call.1} parent=1 // pred_fallthru
      _
    // Predicated region
    $region58: #{tpu_custom_call.1} parent=1 // pred_check
      _
    $region59: #{tpu_custom_call.1} parent=1 // pred_check_branch
      %111 = sbr.rel (0) target = $region61
    $region60: #{tpu_custom_call.1} parent=1 // pred_region
      %112 = dma.done [#allocation11], 1024
    $region61: #{tpu_custom_call.1} parent=1 // pred_fallthru
      _
    // Predicated region
    $region62: #{tpu_custom_call.1} parent=1 // pred_check
      _
    $region63: #{tpu_custom_call.1} parent=1 // pred_check_branch
      %114 = sbr.rel (0) target = $region65
    $region64: #{tpu_custom_call.1} parent=1 // pred_region
      %115 = dma.done [#allocation14], 1024
    $region65: #{tpu_custom_call.1} parent=1 // pred_fallthru
      _
    %p117 = scmp.eq.s32.totalorder 0, 0
    // Predicated region
    $region66: #{tpu_custom_call.1} parent=1 // pred_check
      %p118 = pneg %p117
    $region67: #{tpu_custom_call.1} parent=1 // pred_check_branch
      %120 = sbr.rel (%p118) target = $region69
    $region68: #{tpu_custom_call.1} parent=1 // pred_region
      %v121 = vld [vmem:[#allocation4] sm:$0xff]
      %122 = vst [vmem:[#allocation2] sm:$0xff] %v121
    $region69: #{tpu_custom_call.1} parent=1 // pred_fallthru
      _
    %v123 = vld [vmem:[#allocation7] sm:$0xf]
    %v124 = vld [vmem:[#allocation7 + $0x4] sm:$0xf]
    %v125 = vld [vmem:[#allocation7 + $0x8] sm:$0xf]
    %v126 = vld [vmem:[#allocation7 + $0xc] sm:$0xf]
    %v127 = vld [vmem:[#allocation7 + $0x10] sm:$0xf]
    %v128 = vld [vmem:[#allocation7 + $0x14] sm:$0xf]
    %v129 = vld [vmem:[#allocation7 + $0x18] sm:$0xf]
    %v130 = vld [vmem:[#allocation7 + $0x1c] sm:$0xf]
    %v131 = vld [vmem:[#allocation9] sm:$0xff]
    %v132 = vld [vmem:[#allocation9 + $0x8] sm:$0xf]
    %v133 = vld [vmem:[#allocation9 + $0xc] sm:$0xff]
    %v134 = vld [vmem:[#allocation9 + $0x14] sm:$0xf]
    %v135 = vld [vmem:[%s4] sm:$0x7]
    %v137 = vlaneseq
    %v138 = vshrl.u32 %v137, 7
    %v139 = vsub.s32 0, %v138
    %v140 = vrot.slane %v135, %v139
    %v141 = vlaneseq
    %v142 = vshrl.u32 %v141, 7
    %v143 = vsub.s32 1, %v142
    %v144 = vrot.slane %v135, %v143
    %v145 = vlaneseq
    %v146 = vshrl.u32 %v145, 7
    %v147 = vsub.s32 2, %v146
    %v148 = vrot.slane %v135, %v147
    %v160 = vunpack.c.l.b16 %v123
    %v161 = vunpack.c.l.b16 %v124
    %v162 = vunpack.c.l.b16 %v125
    %v163 = vunpack.c.l.b16 %v126
    %v164 = vunpack.c.l.b16 %v127
    %v165 = vunpack.c.l.b16 %v128
    %v166 = vunpack.c.l.b16 %v129
    %v167 = vunpack.c.l.b16 %v130
    %v168 = vpack.c.b16 %v161, %v160
    %v169 = vpack.c.b16 %v163, %v162
    %v170 = vpack.c.b16 %v165, %v164
    %v171 = vpack.c.b16 %v167, %v166
    %v176 = vunpack.c.l.b16 %v131
    %v177 = vunpack.c.h.b16 %v131
    %v178 = vunpack.c.l.b16 %v132
    %v179 = vunpack.c.l.b16 %v133
    %v180 = vunpack.c.h.b16 %v133
    %v181 = vunpack.c.l.b16 %v134
    %v182 = vpack.c.b16 %v179, %v176
    %v183 = vpack.c.b16 %v180, %v177
    %v184 = vpack.c.b16 %v181, %v178
    %vm188 = vcmask 130048
    %v190 = vsel %vm188, %v168, 0
    %v193 = vsel %vm188, %v169, 0
    %v196 = vsel %vm188, %v170, 0
    %v199 = vsel %vm188, %v171, 0
    %201 = vmatprep.subr.bf16.mxu0 0
    %202 = vmatpush1.bf16.msra.mxu0 0
    %203 = vmatprep.subr.bf16.mxu0 0
    %204 = vmatpush1.bf16.msra.mxu0 0
    %205 = vmatprep.subr.bf16.mxu0 0
    %206 = vmatpush1.bf16.msra.mxu0 0
    %207 = vmatprep.subr.bf16.mxu0 0
    %208 = vmatpush1.bf16.msra.mxu0 0
    %209 = vmatprep.subr.bf16.mxu0 0
    %210 = vmatpush1.bf16.msra.mxu0 0
    %211 = vmatprep.subr.bf16.mxu0 0
    %212 = vmatpush1.bf16.msra.mxu0 0
    %213 = vmatprep.subr.bf16.mxu0 0
    %214 = vmatpush1.bf16.msra.mxu0 0
    %215 = vmatprep.subr.bf16.mxu0 %v183
    %216 = vmatpush1.bf16.msra.mxu0 %v182
    %217 = vmatprep.subr.bf16.mxu0 0
    %218 = vmatpush2.bf16.msra.mxu0 0
    %219 = vmatprep.subr.bf16.mxu0 0
    %220 = vmatpush2.bf16.msra.mxu0 0
    %221 = vmatprep.subr.bf16.mxu0 0
    %222 = vmatpush2.bf16.msra.mxu0 0
    %223 = vmatprep.subr.bf16.mxu0 0
    %224 = vmatpush2.bf16.msra.mxu0 0
    %225 = vmatprep.subr.bf16.mxu0 0
    %226 = vmatpush2.bf16.msra.mxu0 0
    %227 = vmatprep.subr.bf16.mxu0 0
    %228 = vmatpush2.bf16.msra.mxu0 0
    %229 = vmatprep.subr.bf16.mxu0 0
    %230 = vmatpush2.bf16.msra.mxu0 0
    %231 = vmatprep.subr.bf16.mxu0 0
    %232 = vmatpush2.bf16.msra.mxu0 0
    %233 = vmatprep.mubr.bf16.mxu0 0
    %234 = vmatmul.mubr.bf16.gmra.mxu0 %v190
    %v235 = vpop.f32.mrf.mxu0
    %v236 = vadd.f32 %v140, %v235
    %v237 = vpop.f32.mrf.mxu0
    %v238 = vadd.f32 %v144, %v237
    %v239 = vpop.f32.mrf.mxu0
    %v240 = vadd.f32 %v140, %v239
    %v241 = vpop.f32.mrf.mxu0
    %v242 = vadd.f32 %v144, %v241
    %243 = vmatprep.mubr.bf16.mxu0 0
    %244 = vmatmul.mubr.bf16.gmra.mxu0 %v193
    %v245 = vpop.f32.mrf.mxu0
    %v246 = vadd.f32 %v140, %v245
    %v247 = vpop.f32.mrf.mxu0
    %v248 = vadd.f32 %v144, %v247
    %v249 = vpop.f32.mrf.mxu0
    %v250 = vadd.f32 %v140, %v249
    %v251 = vpop.f32.mrf.mxu0
    %v252 = vadd.f32 %v144, %v251
    %253 = vmatprep.mubr.bf16.mxu0 0
    %254 = vmatmul.mubr.bf16.gmra.mxu0 %v196
    %v255 = vpop.f32.mrf.mxu0
    %v256 = vadd.f32 %v140, %v255
    %v257 = vpop.f32.mrf.mxu0
    %v258 = vadd.f32 %v144, %v257
    %v259 = vpop.f32.mrf.mxu0
    %v260 = vadd.f32 %v140, %v259
    %v261 = vpop.f32.mrf.mxu0
    %v262 = vadd.f32 %v144, %v261
    %263 = vmatprep.mubr.bf16.mxu0 0
    %264 = vmatmul.mubr.bf16.gmra.mxu0 %v199
    %v265 = vpop.f32.mrf.mxu0
    %v266 = vadd.f32 %v140, %v265
    %v267 = vpop.f32.mrf.mxu0
    %v268 = vadd.f32 %v144, %v267
    %v269 = vpop.f32.mrf.mxu0
    %v270 = vadd.f32 %v140, %v269
    %v271 = vpop.f32.mrf.mxu0
    %v272 = vadd.f32 %v144, %v271
    %273 = vdwg.mxu0
    %274 = vmatprep.subr.bf16.mxu0 0
    %275 = vmatpush1.bf16.msra.mxu0 0
    %276 = vmatprep.subr.bf16.mxu0 0
    %277 = vmatpush1.bf16.msra.mxu0 0
    %278 = vmatprep.subr.bf16.mxu0 0
    %279 = vmatpush1.bf16.msra.mxu0 0
    %280 = vmatprep.subr.bf16.mxu0 0
    %281 = vmatpush1.bf16.msra.mxu0 0
    %282 = vmatprep.subr.bf16.mxu0 0
    %283 = vmatpush1.bf16.msra.mxu0 0
    %284 = vmatprep.subr.bf16.mxu0 0
    %285 = vmatpush1.bf16.msra.mxu0 0
    %286 = vmatprep.subr.bf16.mxu0 0
    %287 = vmatpush1.bf16.msra.mxu0 0
    %288 = vmatprep.subr.bf16.mxu0 0
    %289 = vmatpush1.bf16.msra.mxu0 %v184
    %290 = vmatprep.subr.bf16.mxu0 0
    %291 = vmatpush2.bf16.msra.mxu0 0
    %292 = vmatprep.subr.bf16.mxu0 0
    %293 = vmatpush2.bf16.msra.mxu0 0
    %294 = vmatprep.subr.bf16.mxu0 0
    %295 = vmatpush2.bf16.msra.mxu0 0
    %296 = vmatprep.subr.bf16.mxu0 0
    %297 = vmatpush2.bf16.msra.mxu0 0
    %298 = vmatprep.subr.bf16.mxu0 0
    %299 = vmatpush2.bf16.msra.mxu0 0
    %300 = vmatprep.subr.bf16.mxu0 0
    %301 = vmatpush2.bf16.msra.mxu0 0
    %302 = vmatprep.subr.bf16.mxu0 0
    %303 = vmatpush2.bf16.msra.mxu0 0
    %304 = vmatprep.subr.bf16.mxu0 0
    %305 = vmatpush2.bf16.msra.mxu0 0
    %306 = vmatprep.mubr.bf16.mxu0 0
    %307 = vmatmul.mubr.bf16.gmra.mxu0 %v190
    %v308 = vpop.f32.mrf.mxu0
    %v309 = vadd.f32 %v148, %v308
    %v310 = vpop.f32.mrf.mxu0
    %v311 = vpop.f32.mrf.mxu0
    %v312 = vadd.f32 %v148, %v311
    %v313 = vpop.f32.mrf.mxu0
    %314 = vmatprep.mubr.bf16.mxu0 0
    %315 = vmatmul.mubr.bf16.gmra.mxu0 %v193
    %v316 = vpop.f32.mrf.mxu0
    %v317 = vadd.f32 %v148, %v316
    %v318 = vpop.f32.mrf.mxu0
    %v319 = vpop.f32.mrf.mxu0
    %v320 = vadd.f32 %v148, %v319
    %v321 = vpop.f32.mrf.mxu0
    %322 = vmatprep.mubr.bf16.mxu0 0
    %323 = vmatmul.mubr.bf16.gmra.mxu0 %v196
    %v324 = vpop.f32.mrf.mxu0
    %v325 = vadd.f32 %v148, %v324
    %v326 = vpop.f32.mrf.mxu0
    %v327 = vpop.f32.mrf.mxu0
    %v328 = vadd.f32 %v148, %v327
    %v329 = vpop.f32.mrf.mxu0
    %330 = vmatprep.mubr.bf16.mxu0 0
    %331 = vmatmul.mubr.bf16.gmra.mxu0 %v199
    %v332 = vpop.f32.mrf.mxu0
    %v333 = vadd.f32 %v148, %v332
    %v334 = vpop.f32.mrf.mxu0
    %v335 = vpop.f32.mrf.mxu0
    %v336 = vadd.f32 %v148, %v335
    %v337 = vpop.f32.mrf.mxu0
    %338 = vdwg.mxu0
    %339 = vst [vmem:[#allocation3] sm:$0xff] %v236
    %340 = vst [vmem:[#allocation3 + $0x8] sm:$0xff] %v238
    %341 = vst [vmem:[#allocation3 + $0x10] sm:$0xff] %v309
    %342 = vst [vmem:[#allocation3 + $0x18] sm:$0xff] %v240
    %343 = vst [vmem:[#allocation3 + $0x20] sm:$0xff] %v242
    %344 = vst [vmem:[#allocation3 + $0x28] sm:$0xff] %v312
    %345 = vst [vmem:[#allocation3 + $0x30] sm:$0xff] %v246
    %346 = vst [vmem:[#allocation3 + $0x38] sm:$0xff] %v248
    %347 = vst [vmem:[#allocation3 + $0x40] sm:$0xff] %v317
    %348 = vst [vmem:[#allocation3 + $0x48] sm:$0xff] %v250
    %349 = vst [vmem:[#allocation3 + $0x50] sm:$0xff] %v252
    %350 = vst [vmem:[#allocation3 + $0x58] sm:$0xff] %v320
    %351 = vst [vmem:[#allocation3 + $0x60] sm:$0xff] %v256
    %352 = vst [vmem:[#allocation3 + $0x68] sm:$0xff] %v258
    %353 = vst [vmem:[#allocation3 + $0x70] sm:$0xff] %v325
    %354 = vst [vmem:[#allocation3 + $0x78] sm:$0xff] %v260
    %355 = vst [vmem:[#allocation3 + $0x80] sm:$0xff] %v262
    %356 = vst [vmem:[#allocation3 + $0x88] sm:$0xff] %v328
    %357 = vst [vmem:[#allocation3 + $0x90] sm:$0xff] %v266
    %358 = vst [vmem:[#allocation3 + $0x98] sm:$0xff] %v268
    %359 = vst [vmem:[#allocation3 + $0xa0] sm:$0xff] %v333
    %360 = vst [vmem:[#allocation3 + $0xa8] sm:$0xff] %v270
    %361 = vst [vmem:[#allocation3 + $0xb0] sm:$0xff] %v272
    %362 = vst [vmem:[#allocation3 + $0xb8] sm:$0xff] %v336
    %v363 = vld [vmem:[#allocation10] sm:$0xff]
    %v364 = vld [vmem:[#allocation10 + $0x8] sm:$0xf]
    %v365 = vld [vmem:[#allocation10 + $0xc] sm:$0xff]
    %v366 = vld [vmem:[#allocation10 + $0x14] sm:$0xf]
    %v367 = vld [vmem:[#allocation10 + $0x18] sm:$0xff]
    %v368 = vld [vmem:[#allocation10 + $0x20] sm:$0xf]
    %v369 = vld [vmem:[#allocation10 + $0x24] sm:$0xff]
    %v370 = vld [vmem:[#allocation10 + $0x2c] sm:$0xf]
    %v371 = vld [vmem:[#allocation10 + $0x30] sm:$0xff]
    %v372 = vld [vmem:[#allocation10 + $0x38] sm:$0xf]
    %v373 = vld [vmem:[#allocation10 + $0x3c] sm:$0xff]
    %v374 = vld [vmem:[#allocation10 + $0x44] sm:$0xf]
    %v375 = vld [vmem:[#allocation10 + $0x48] sm:$0xff]
    %v376 = vld [vmem:[#allocation10 + $0x50] sm:$0xf]
    %v377 = vld [vmem:[#allocation10 + $0x54] sm:$0xff]
    %v378 = vld [vmem:[#allocation10 + $0x5c] sm:$0xf]
    %v379 = vld [vmem:[#allocation10 + $0x60] sm:$0xff]
    %v380 = vld [vmem:[#allocation10 + $0x68] sm:$0xf]
    %v381 = vld [vmem:[#allocation10 + $0x6c] sm:$0xff]
    %v382 = vld [vmem:[#allocation10 + $0x74] sm:$0xf]
    %v383 = vld [vmem:[#allocation10 + $0x78] sm:$0xff]
    %v384 = vld [vmem:[#allocation10 + $0x80] sm:$0xf]
    %v385 = vld [vmem:[#allocation10 + $0x84] sm:$0xff]
    %v386 = vld [vmem:[#allocation10 + $0x8c] sm:$0xf]
    %v387 = vld [vmem:[#allocation10 + $0x90] sm:$0xff]
    %v388 = vld [vmem:[#allocation10 + $0x98] sm:$0xf]
    %v389 = vld [vmem:[#allocation10 + $0x9c] sm:$0xff]
    %v390 = vld [vmem:[#allocation10 + $0xa4] sm:$0xf]
    %v391 = vld [vmem:[#allocation10 + $0xa8] sm:$0xff]
    %v392 = vld [vmem:[#allocation10 + $0xb0] sm:$0xf]
    %v393 = vld [vmem:[#allocation10 + $0xb4] sm:$0xff]
    %v394 = vld [vmem:[#allocation10 + $0xbc] sm:$0xf]
    %v395 = vld [vmem:[%s5] sm:$0x1]
    %v397 = vlaneseq
    %v398 = vshrl.u32 %v397, 7
    %v399 = vsub.s32 0, %v398
    %v400 = vrot.slane %v395, %v399
    %v402 = vld [vmem:[#allocation2] sm:$0xff]
    %v403 = vld [vmem:[#allocation3] sm:$0xff]
    %v404 = vld [vmem:[#allocation3 + $0x8] sm:$0xff]
    %v405 = vld [vmem:[#allocation3 + $0x10] sm:$0xff]
    %v406 = vpack.c.bf16 %v402, %v402
    %v439 = vunpack.c.l.b16 %v363
    %v440 = vunpack.c.h.b16 %v363
    %v441 = vunpack.c.l.b16 %v364
    %v442 = vunpack.c.l.b16 %v365
    %v443 = vunpack.c.h.b16 %v365
    %v444 = vunpack.c.l.b16 %v366
    %v445 = vunpack.c.l.b16 %v367
    %v446 = vunpack.c.h.b16 %v367
    %v447 = vunpack.c.l.b16 %v368
    %v448 = vunpack.c.l.b16 %v369
    %v449 = vunpack.c.h.b16 %v369
    %v450 = vunpack.c.l.b16 %v370
    %v451 = vunpack.c.l.b16 %v371
    %v452 = vunpack.c.h.b16 %v371
    %v453 = vunpack.c.l.b16 %v372
    %v454 = vunpack.c.l.b16 %v373
    %v455 = vunpack.c.h.b16 %v373
    %v456 = vunpack.c.l.b16 %v374
    %v457 = vunpack.c.l.b16 %v375
    %v458 = vunpack.c.h.b16 %v375
    %v459 = vunpack.c.l.b16 %v376
    %v460 = vunpack.c.l.b16 %v377
    %v461 = vunpack.c.h.b16 %v377
    %v462 = vunpack.c.l.b16 %v378
    %v463 = vunpack.c.l.b16 %v379
    %v464 = vunpack.c.h.b16 %v379
    %v465 = vunpack.c.l.b16 %v380
    %v466 = vunpack.c.l.b16 %v381
    %v467 = vunpack.c.h.b16 %v381
    %v468 = vunpack.c.l.b16 %v382
    %v469 = vunpack.c.l.b16 %v383
    %v470 = vunpack.c.h.b16 %v383
    %v471 = vunpack.c.l.b16 %v384
    %v472 = vunpack.c.l.b16 %v385
    %v473 = vunpack.c.h.b16 %v385
    %v474 = vunpack.c.l.b16 %v386
    %v475 = vunpack.c.l.b16 %v387
    %v476 = vunpack.c.h.b16 %v387
    %v477 = vunpack.c.l.b16 %v388
    %v478 = vunpack.c.l.b16 %v389
    %v479 = vunpack.c.h.b16 %v389
    %v480 = vunpack.c.l.b16 %v390
    %v481 = vunpack.c.l.b16 %v391
    %v482 = vunpack.c.h.b16 %v391
    %v483 = vunpack.c.l.b16 %v392
    %v484 = vunpack.c.l.b16 %v393
    %v485 = vunpack.c.h.b16 %v393
    %v486 = vunpack.c.l.b16 %v394
    %v487 = vpack.c.b16 %v442, %v439
    %v488 = vpack.c.b16 %v443, %v440
    %v489 = vpack.c.b16 %v444, %v441
    %v490 = vpack.c.b16 %v448, %v445
    %v491 = vpack.c.b16 %v449, %v446
    %v492 = vpack.c.b16 %v450, %v447
    %v493 = vpack.c.b16 %v454, %v451
    %v494 = vpack.c.b16 %v455, %v452
    %v495 = vpack.c.b16 %v456, %v453
    %v496 = vpack.c.b16 %v460, %v457
    %v497 = vpack.c.b16 %v461, %v458
    %v498 = vpack.c.b16 %v462, %v459
    %v499 = vpack.c.b16 %v466, %v463
    %v500 = vpack.c.b16 %v467, %v464
    %v501 = vpack.c.b16 %v468, %v465
    %v502 = vpack.c.b16 %v472, %v469
    %v503 = vpack.c.b16 %v473, %v470
    %v504 = vpack.c.b16 %v474, %v471
    %v505 = vpack.c.b16 %v478, %v475
    %v506 = vpack.c.b16 %v479, %v476
    %v507 = vpack.c.b16 %v480, %v477
    %v508 = vpack.c.b16 %v484, %v481
    %v509 = vpack.c.b16 %v485, %v482
    %v510 = vpack.c.b16 %v486, %v483
    %535 = vmatprep.subr.bf16.mxu0 %v509
    %536 = vmatpush1.bf16.msra.mxu0 %v508
    %537 = vmatprep.subr.bf16.mxu0 %v506
    %538 = vmatpush1.bf16.msra.mxu0 %v505
    %539 = vmatprep.subr.bf16.mxu0 %v503
    %540 = vmatpush1.bf16.msra.mxu0 %v502
    %541 = vmatprep.subr.bf16.mxu0 %v500
    %542 = vmatpush1.bf16.msra.mxu0 %v499
    %543 = vmatprep.subr.bf16.mxu0 %v497
    %544 = vmatpush1.bf16.msra.mxu0 %v496
    %545 = vmatprep.subr.bf16.mxu0 %v494
    %546 = vmatpush1.bf16.msra.mxu0 %v493
    %547 = vmatprep.subr.bf16.mxu0 %v491
    %548 = vmatpush1.bf16.msra.mxu0 %v490
    %549 = vmatprep.subr.bf16.mxu0 %v488
    %550 = vmatpush1.bf16.msra.mxu0 %v487
    %551 = vmatprep.subr.bf16.mxu0 0
    %552 = vmatpush2.bf16.msra.mxu0 0
    %553 = vmatprep.subr.bf16.mxu0 0
    %554 = vmatpush2.bf16.msra.mxu0 0
    %555 = vmatprep.subr.bf16.mxu0 0
    %556 = vmatpush2.bf16.msra.mxu0 0
    %557 = vmatprep.subr.bf16.mxu0 0
    %558 = vmatpush2.bf16.msra.mxu0 0
    %559 = vmatprep.subr.bf16.mxu0 0
    %560 = vmatpush2.bf16.msra.mxu0 0
    %561 = vmatprep.subr.bf16.mxu0 0
    %562 = vmatpush2.bf16.msra.mxu0 0
    %563 = vmatprep.subr.bf16.mxu0 0
    %564 = vmatpush2.bf16.msra.mxu0 0
    %565 = vmatprep.subr.bf16.mxu0 0
    %566 = vmatpush2.bf16.msra.mxu0 0
    %567 = vmatprep.mubr.bf16.mxu0 0
    %568 = vmatmul.mubr.bf16.gmra.mxu0 %v406
    %v569 = vpop.f32.mrf.mxu0
    %v570 = vadd.f32 0.0, %v569
    %v571 = vpop.f32.mrf.mxu0
    %v572 = vadd.f32 0.0, %v571
    %v573 = vpop.f32.mrf.mxu0
    %v574 = vpop.f32.mrf.mxu0
    %575 = vdwg.mxu0
    %576 = vmatprep.subr.bf16.mxu0 0
    %577 = vmatpush1.bf16.msra.mxu0 %v510
    %578 = vmatprep.subr.bf16.mxu0 0
    %579 = vmatpush1.bf16.msra.mxu0 %v507
    %580 = vmatprep.subr.bf16.mxu0 0
    %581 = vmatpush1.bf16.msra.mxu0 %v504
    %582 = vmatprep.subr.bf16.mxu0 0
    %583 = vmatpush1.bf16.msra.mxu0 %v501
    %584 = vmatprep.subr.bf16.mxu0 0
    %585 = vmatpush1.bf16.msra.mxu0 %v498
    %586 = vmatprep.subr.bf16.mxu0 0
    %587 = vmatpush1.bf16.msra.mxu0 %v495
    %588 = vmatprep.subr.bf16.mxu0 0
    %589 = vmatpush1.bf16.msra.mxu0 %v492
    %590 = vmatprep.subr.bf16.mxu0 0
    %591 = vmatpush1.bf16.msra.mxu0 %v489
    %592 = vmatprep.subr.bf16.mxu0 0
    %593 = vmatpush2.bf16.msra.mxu0 0
    %594 = vmatprep.subr.bf16.mxu0 0
    %595 = vmatpush2.bf16.msra.mxu0 0
    %596 = vmatprep.subr.bf16.mxu0 0
    %597 = vmatpush2.bf16.msra.mxu0 0
    %598 = vmatprep.subr.bf16.mxu0 0
    %599 = vmatpush2.bf16.msra.mxu0 0
    %600 = vmatprep.subr.bf16.mxu0 0
    %601 = vmatpush2.bf16.msra.mxu0 0
    %602 = vmatprep.subr.bf16.mxu0 0
    %603 = vmatpush2.bf16.msra.mxu0 0
    %604 = vmatprep.subr.bf16.mxu0 0
    %605 = vmatpush2.bf16.msra.mxu0 0
    %606 = vmatprep.subr.bf16.mxu0 0
    %607 = vmatpush2.bf16.msra.mxu0 0
    %608 = vmatprep.mubr.bf16.mxu0 0
    %609 = vmatmul.mubr.bf16.gmra.mxu0 %v406
    %v610 = vpop.f32.mrf.mxu0
    %v611 = vadd.f32 0.0, %v610
    %v612 = vpop.f32.mrf.mxu0
    %v613 = vpop.f32.mrf.mxu0
    %v614 = vpop.f32.mrf.mxu0
    %615 = vdwg.mxu0
    %v616 = vadd.f32 %v403, %v570
    %v617 = vxor.u32 %v616, 2147483648
    %v618 = vmul.f32 %v617, 1.442695
    %v619 = vpow.pop %v618
    %v620 = vadd.f32 %v619, 1.0
    %v621 = vrcp.pop %v620
    %v622 = vmul.f32 1.0, %v621
    %v623 = vadd.f32 %v404, %v572
    %v624 = vxor.u32 %v623, 2147483648
    %v625 = vmul.f32 %v624, 1.442695
    %v626 = vpow.pop %v625
    %v627 = vadd.f32 %v626, 1.0
    %v628 = vrcp.pop %v627
    %v629 = vmul.f32 1.0, %v628
    %v630 = vadd.f32 %v611, %v400
    %v631 = vmul.f32 %v622, %v630
    %v632 = vadd.f32 %v405, %v631
    %v633 = vtanh.pop %v632
    %v634 = vsub.f32 1.0, %v629
    %v635 = vmul.f32 %v634, %v633
    %v636 = vmul.f32 %v629, %v402
    %v637 = vadd.f32 %v635, %v636
    %s638 = scalar_lea.vmem [#allocation3], 24
    %v639 = vld [vmem:[%s638] sm:$0xff]
    %v640 = vld [vmem:[%s638 + $0x8] sm:$0xff]
    %v641 = vld [vmem:[%s638 + $0x10] sm:$0xff]
    %v642 = vpack.c.bf16 %v637, %v637
    %643 = vmatprep.subr.bf16.mxu0 %v509
    %644 = vmatpush1.bf16.msra.mxu0 %v508
    %645 = vmatprep.subr.bf16.mxu0 %v506
    %646 = vmatpush1.bf16.msra.mxu0 %v505
    %647 = vmatprep.subr.bf16.mxu0 %v503
    %648 = vmatpush1.bf16.msra.mxu0 %v502
    %649 = vmatprep.subr.bf16.mxu0 %v500
    %650 = vmatpush1.bf16.msra.mxu0 %v499
    %651 = vmatprep.subr.bf16.mxu0 %v497
    %652 = vmatpush1.bf16.msra.mxu0 %v496
    %653 = vmatprep.subr.bf16.mxu0 %v494
    %654 = vmatpush1.bf16.msra.mxu0 %v493
    %655 = vmatprep.subr.bf16.mxu0 %v491
    %656 = vmatpush1.bf16.msra.mxu0 %v490
    %657 = vmatprep.subr.bf16.mxu0 %v488
    %658 = vmatpush1.bf16.msra.mxu0 %v487
    %659 = vmatprep.subr.bf16.mxu0 0
    %660 = vmatpush2.bf16.msra.mxu0 0
    %661 = vmatprep.subr.bf16.mxu0 0
    %662 = vmatpush2.bf16.msra.mxu0 0
    %663 = vmatprep.subr.bf16.mxu0 0
    %664 = vmatpush2.bf16.msra.mxu0 0
    %665 = vmatprep.subr.bf16.mxu0 0
    %666 = vmatpush2.bf16.msra.mxu0 0
    %667 = vmatprep.subr.bf16.mxu0 0
    %668 = vmatpush2.bf16.msra.mxu0 0
    %669 = vmatprep.subr.bf16.mxu0 0
    %670 = vmatpush2.bf16.msra.mxu0 0
    %671 = vmatprep.subr.bf16.mxu0 0
    %672 = vmatpush2.bf16.msra.mxu0 0
    %673 = vmatprep.subr.bf16.mxu0 0
    %674 = vmatpush2.bf16.msra.mxu0 0
    %675 = vmatprep.mubr.bf16.mxu0 0
    %676 = vmatmul.mubr.bf16.gmra.mxu0 %v642
    %v677 = vpop.f32.mrf.mxu0
    %v678 = vadd.f32 0.0, %v677
    %v679 = vpop.f32.mrf.mxu0
    %v680 = vadd.f32 0.0, %v679
    %v681 = vpop.f32.mrf.mxu0
    %v682 = vpop.f32.mrf.mxu0
    %683 = vdwg.mxu0
    %684 = vmatprep.subr.bf16.mxu0 0
    %685 = vmatpush1.bf16.msra.mxu0 %v510
    %686 = vmatprep.subr.bf16.mxu0 0
    %687 = vmatpush1.bf16.msra.mxu0 %v507
    %688 = vmatprep.subr.bf16.mxu0 0
    %689 = vmatpush1.bf16.msra.mxu0 %v504
    %690 = vmatprep.subr.bf16.mxu0 0
    %691 = vmatpush1.bf16.msra.mxu0 %v501
    %692 = vmatprep.subr.bf16.mxu0 0
    %693 = vmatpush1.bf16.msra.mxu0 %v498
    %694 = vmatprep.subr.bf16.mxu0 0
    %695 = vmatpush1.bf16.msra.mxu0 %v495
    %696 = vmatprep.subr.bf16.mxu0 0
    %697 = vmatpush1.bf16.msra.mxu0 %v492
    %698 = vmatprep.subr.bf16.mxu0 0
    %699 = vmatpush1.bf16.msra.mxu0 %v489
    %700 = vmatprep.subr.bf16.mxu0 0
    %701 = vmatpush2.bf16.msra.mxu0 0
    %702 = vmatprep.subr.bf16.mxu0 0
    %703 = vmatpush2.bf16.msra.mxu0 0
    %704 = vmatprep.subr.bf16.mxu0 0
    %705 = vmatpush2.bf16.msra.mxu0 0
    %706 = vmatprep.subr.bf16.mxu0 0
    %707 = vmatpush2.bf16.msra.mxu0 0
    %708 = vmatprep.subr.bf16.mxu0 0
    %709 = vmatpush2.bf16.msra.mxu0 0
    %710 = vmatprep.subr.bf16.mxu0 0
    %711 = vmatpush2.bf16.msra.mxu0 0
    %712 = vmatprep.subr.bf16.mxu0 0
    %713 = vmatpush2.bf16.msra.mxu0 0
    %714 = vmatprep.subr.bf16.mxu0 0
    %715 = vmatpush2.bf16.msra.mxu0 0
    %716 = vmatprep.mubr.bf16.mxu0 0
    %717 = vmatmul.mubr.bf16.gmra.mxu0 %v642
    %v718 = vpop.f32.mrf.mxu0
    %v719 = vadd.f32 0.0, %v718
    %v720 = vpop.f32.mrf.mxu0
    %v721 = vpop.f32.mrf.mxu0
    %v722 = vpop.f32.mrf.mxu0
    %723 = vdwg.mxu0
    %v724 = vadd.f32 %v639, %v678
    %v725 = vxor.u32 %v724, 2147483648
    %v726 = vmul.f32 %v725, 1.442695
    %v727 = vpow.pop %v726
    %v728 = vadd.f32 %v727, 1.0
    %v729 = vrcp.pop %v728
    %v730 = vmul.f32 1.0, %v729
    %v731 = vadd.f32 %v640, %v680
    %v732 = vxor.u32 %v731, 2147483648
    %v733 = vmul.f32 %v732, 1.442695
    %v734 = vpow.pop %v733
    %v735 = vadd.f32 %v734, 1.0
    %v736 = vrcp.pop %v735
    %v737 = vmul.f32 1.0, %v736
    %v738 = vadd.f32 %v719, %v400
    %v739 = vmul.f32 %v730, %v738
    %v740 = vadd.f32 %v641, %v739
    %v741 = vtanh.pop %v740
    %v742 = vsub.f32 1.0, %v737
    %v743 = vmul.f32 %v742, %v741
    %v744 = vmul.f32 %v737, %v637
    %v745 = vadd.f32 %v743, %v744
    %s746 = scalar_lea.vmem [#allocation3], 48
    %v747 = vld [vmem:[%s746] sm:$0xff]
    %v748 = vld [vmem:[%s746 + $0x8] sm:$0xff]
    %v749 = vld [vmem:[%s746 + $0x10] sm:$0xff]
    %v750 = vpack.c.bf16 %v745, %v745
    %751 = vmatprep.subr.bf16.mxu0 %v509
    %752 = vmatpush1.bf16.msra.mxu0 %v508
    %753 = vmatprep.subr.bf16.mxu0 %v506
    %754 = vmatpush1.bf16.msra.mxu0 %v505
    %755 = vmatprep.subr.bf16.mxu0 %v503
    %756 = vmatpush1.bf16.msra.mxu0 %v502
    %757 = vmatprep.subr.bf16.mxu0 %v500
    %758 = vmatpush1.bf16.msra.mxu0 %v499
    %759 = vmatprep.subr.bf16.mxu0 %v497
    %760 = vmatpush1.bf16.msra.mxu0 %v496
    %761 = vmatprep.subr.bf16.mxu0 %v494
    %762 = vmatpush1.bf16.msra.mxu0 %v493
    %763 = vmatprep.subr.bf16.mxu0 %v491
    %764 = vmatpush1.bf16.msra.mxu0 %v490
    %765 = vmatprep.subr.bf16.mxu0 %v488
    %766 = vmatpush1.bf16.msra.mxu0 %v487
    %767 = vmatprep.subr.bf16.mxu0 0
    %768 = vmatpush2.bf16.msra.mxu0 0
    %769 = vmatprep.subr.bf16.mxu0 0
    %770 = vmatpush2.bf16.msra.mxu0 0
    %771 = vmatprep.subr.bf16.mxu0 0
    %772 = vmatpush2.bf16.msra.mxu0 0
    %773 = vmatprep.subr.bf16.mxu0 0
    %774 = vmatpush2.bf16.msra.mxu0 0
    %775 = vmatprep.subr.bf16.mxu0 0
    %776 = vmatpush2.bf16.msra.mxu0 0
    %777 = vmatprep.subr.bf16.mxu0 0
    %778 = vmatpush2.bf16.msra.mxu0 0
    %779 = vmatprep.subr.bf16.mxu0 0
    %780 = vmatpush2.bf16.msra.mxu0 0
    %781 = vmatprep.subr.bf16.mxu0 0
    %782 = vmatpush2.bf16.msra.mxu0 0
    %783 = vmatprep.mubr.bf16.mxu0 0
    %784 = vmatmul.mubr.bf16.gmra.mxu0 %v750
    %v785 = vpop.f32.mrf.mxu0
    %v786 = vadd.f32 0.0, %v785
    %v787 = vpop.f32.mrf.mxu0
    %v788 = vadd.f32 0.0, %v787
    %v789 = vpop.f32.mrf.mxu0
    %v790 = vpop.f32.mrf.mxu0
    %791 = vdwg.mxu0
    %792 = vmatprep.subr.bf16.mxu0 0
    %793 = vmatpush1.bf16.msra.mxu0 %v510
    %794 = vmatprep.subr.bf16.mxu0 0
    %795 = vmatpush1.bf16.msra.mxu0 %v507
    %796 = vmatprep.subr.bf16.mxu0 0
    %797 = vmatpush1.bf16.msra.mxu0 %v504
    %798 = vmatprep.subr.bf16.mxu0 0
    %799 = vmatpush1.bf16.msra.mxu0 %v501
    %800 = vmatprep.subr.bf16.mxu0 0
    %801 = vmatpush1.bf16.msra.mxu0 %v498
    %802 = vmatprep.subr.bf16.mxu0 0
    %803 = vmatpush1.bf16.msra.mxu0 %v495
    %804 = vmatprep.subr.bf16.mxu0 0
    %805 = vmatpush1.bf16.msra.mxu0 %v492
    %806 = vmatprep.subr.bf16.mxu0 0
    %807 = vmatpush1.bf16.msra.mxu0 %v489
    %808 = vmatprep.subr.bf16.mxu0 0
    %809 = vmatpush2.bf16.msra.mxu0 0
    %810 = vmatprep.subr.bf16.mxu0 0
    %811 = vmatpush2.bf16.msra.mxu0 0
    %812 = vmatprep.subr.bf16.mxu0 0
    %813 = vmatpush2.bf16.msra.mxu0 0
    %814 = vmatprep.subr.bf16.mxu0 0
    %815 = vmatpush2.bf16.msra.mxu0 0
    %816 = vmatprep.subr.bf16.mxu0 0
    %817 = vmatpush2.bf16.msra.mxu0 0
    %818 = vmatprep.subr.bf16.mxu0 0
    %819 = vmatpush2.bf16.msra.mxu0 0
    %820 = vmatprep.subr.bf16.mxu0 0
    %821 = vmatpush2.bf16.msra.mxu0 0
    %822 = vmatprep.subr.bf16.mxu0 0
    %823 = vmatpush2.bf16.msra.mxu0 0
    %824 = vmatprep.mubr.bf16.mxu0 0
    %825 = vmatmul.mubr.bf16.gmra.mxu0 %v750
    %v826 = vpop.f32.mrf.mxu0
    %v827 = vadd.f32 0.0, %v826
    %v828 = vpop.f32.mrf.mxu0
    %v829 = vpop.f32.mrf.mxu0
    %v830 = vpop.f32.mrf.mxu0
    %831 = vdwg.mxu0
    %v832 = vadd.f32 %v747, %v786
    %v833 = vxor.u32 %v832, 2147483648
    %v834 = vmul.f32 %v833, 1.442695
    %v835 = vpow.pop %v834
    %v836 = vadd.f32 %v835, 1.0
    %v837 = vrcp.pop %v836
    %v838 = vmul.f32 1.0, %v837
    %v839 = vadd.f32 %v748, %v788
    %v840 = vxor.u32 %v839, 2147483648
    %v841 = vmul.f32 %v840, 1.442695
    %v842 = vpow.pop %v841
    %v843 = vadd.f32 %v842, 1.0
    %v844 = vrcp.pop %v843
    %v845 = vmul.f32 1.0, %v844
    %v846 = vadd.f32 %v827, %v400
    %v847 = vmul.f32 %v838, %v846
    %v848 = vadd.f32 %v749, %v847
    %v849 = vtanh.pop %v848
    %v850 = vsub.f32 1.0, %v845
    %v851 = vmul.f32 %v850, %v849
    %v852 = vmul.f32 %v845, %v745
    %v853 = vadd.f32 %v851, %v852
    %s854 = scalar_lea.vmem [#allocation3], 72
    %v855 = vld [vmem:[%s854] sm:$0xff]
    %v856 = vld [vmem:[%s854 + $0x8] sm:$0xff]
    %v857 = vld [vmem:[%s854 + $0x10] sm:$0xff]
    %v858 = vpack.c.bf16 %v853, %v853
    %859 = vmatprep.subr.bf16.mxu0 %v509
    %860 = vmatpush1.bf16.msra.mxu0 %v508
    %861 = vmatprep.subr.bf16.mxu0 %v506
    %862 = vmatpush1.bf16.msra.mxu0 %v505
    %863 = vmatprep.subr.bf16.mxu0 %v503
    %864 = vmatpush1.bf16.msra.mxu0 %v502
    %865 = vmatprep.subr.bf16.mxu0 %v500
    %866 = vmatpush1.bf16.msra.mxu0 %v499
    %867 = vmatprep.subr.bf16.mxu0 %v497
    %868 = vmatpush1.bf16.msra.mxu0 %v496
    %869 = vmatprep.subr.bf16.mxu0 %v494
    %870 = vmatpush1.bf16.msra.mxu0 %v493
    %871 = vmatprep.subr.bf16.mxu0 %v491
    %872 = vmatpush1.bf16.msra.mxu0 %v490
    %873 = vmatprep.subr.bf16.mxu0 %v488
    %874 = vmatpush1.bf16.msra.mxu0 %v487
    %875 = vmatprep.subr.bf16.mxu0 0
    %876 = vmatpush2.bf16.msra.mxu0 0
    %877 = vmatprep.subr.bf16.mxu0 0
    %878 = vmatpush2.bf16.msra.mxu0 0
    %879 = vmatprep.subr.bf16.mxu0 0
    %880 = vmatpush2.bf16.msra.mxu0 0
    %881 = vmatprep.subr.bf16.mxu0 0
    %882 = vmatpush2.bf16.msra.mxu0 0
    %883 = vmatprep.subr.bf16.mxu0 0
    %884 = vmatpush2.bf16.msra.mxu0 0
    %885 = vmatprep.subr.bf16.mxu0 0
    %886 = vmatpush2.bf16.msra.mxu0 0
    %887 = vmatprep.subr.bf16.mxu0 0
    %888 = vmatpush2.bf16.msra.mxu0 0
    %889 = vmatprep.subr.bf16.mxu0 0
    %890 = vmatpush2.bf16.msra.mxu0 0
    %891 = vmatprep.mubr.bf16.mxu0 0
    %892 = vmatmul.mubr.bf16.gmra.mxu0 %v858
    %v893 = vpop.f32.mrf.mxu0
    %v894 = vadd.f32 0.0, %v893
    %v895 = vpop.f32.mrf.mxu0
    %v896 = vadd.f32 0.0, %v895
    %v897 = vpop.f32.mrf.mxu0
    %v898 = vpop.f32.mrf.mxu0
    %899 = vdwg.mxu0
    %900 = vmatprep.subr.bf16.mxu0 0
    %901 = vmatpush1.bf16.msra.mxu0 %v510
    %902 = vmatprep.subr.bf16.mxu0 0
    %903 = vmatpush1.bf16.msra.mxu0 %v507
    %904 = vmatprep.subr.bf16.mxu0 0
    %905 = vmatpush1.bf16.msra.mxu0 %v504
    %906 = vmatprep.subr.bf16.mxu0 0
    %907 = vmatpush1.bf16.msra.mxu0 %v501
    %908 = vmatprep.subr.bf16.mxu0 0
    %909 = vmatpush1.bf16.msra.mxu0 %v498
    %910 = vmatprep.subr.bf16.mxu0 0
    %911 = vmatpush1.bf16.msra.mxu0 %v495
    %912 = vmatprep.subr.bf16.mxu0 0
    %913 = vmatpush1.bf16.msra.mxu0 %v492
    %914 = vmatprep.subr.bf16.mxu0 0
    %915 = vmatpush1.bf16.msra.mxu0 %v489
    %916 = vmatprep.subr.bf16.mxu0 0
    %917 = vmatpush2.bf16.msra.mxu0 0
    %918 = vmatprep.subr.bf16.mxu0 0
    %919 = vmatpush2.bf16.msra.mxu0 0
    %920 = vmatprep.subr.bf16.mxu0 0
    %921 = vmatpush2.bf16.msra.mxu0 0
    %922 = vmatprep.subr.bf16.mxu0 0
    %923 = vmatpush2.bf16.msra.mxu0 0
    %924 = vmatprep.subr.bf16.mxu0 0
    %925 = vmatpush2.bf16.msra.mxu0 0
    %926 = vmatprep.subr.bf16.mxu0 0
    %927 = vmatpush2.bf16.msra.mxu0 0
    %928 = vmatprep.subr.bf16.mxu0 0
    %929 = vmatpush2.bf16.msra.mxu0 0
    %930 = vmatprep.subr.bf16.mxu0 0
    %931 = vmatpush2.bf16.msra.mxu0 0
    %932 = vmatprep.mubr.bf16.mxu0 0
    %933 = vmatmul.mubr.bf16.gmra.mxu0 %v858
    %v934 = vpop.f32.mrf.mxu0
    %v935 = vadd.f32 0.0, %v934
    %v936 = vpop.f32.mrf.mxu0
    %v937 = vpop.f32.mrf.mxu0
    %v938 = vpop.f32.mrf.mxu0
    %939 = vdwg.mxu0
    %v940 = vadd.f32 %v855, %v894
    %v941 = vxor.u32 %v940, 2147483648
    %v942 = vmul.f32 %v941, 1.442695
    %v943 = vpow.pop %v942
    %v944 = vadd.f32 %v943, 1.0
    %v945 = vrcp.pop %v944
    %v946 = vmul.f32 1.0, %v945
    %v947 = vadd.f32 %v856, %v896
    %v948 = vxor.u32 %v947, 2147483648
    %v949 = vmul.f32 %v948, 1.442695
    %v950 = vpow.pop %v949
    %v951 = vadd.f32 %v950, 1.0
    %v952 = vrcp.pop %v951
    %v953 = vmul.f32 1.0, %v952
    %v954 = vadd.f32 %v935, %v400
    %v955 = vmul.f32 %v946, %v954
    %v956 = vadd.f32 %v857, %v955
    %v957 = vtanh.pop %v956
    %v958 = vsub.f32 1.0, %v953
    %v959 = vmul.f32 %v958, %v957
    %v960 = vmul.f32 %v953, %v853
    %v961 = vadd.f32 %v959, %v960
    %s962 = scalar_lea.vmem [#allocation3], 96
    %v963 = vld [vmem:[%s962] sm:$0xff]
    %v964 = vld [vmem:[%s962 + $0x8] sm:$0xff]
    %v965 = vld [vmem:[%s962 + $0x10] sm:$0xff]
    %v966 = vpack.c.bf16 %v961, %v961
    %967 = vmatprep.subr.bf16.mxu0 %v509
    %968 = vmatpush1.bf16.msra.mxu0 %v508
    %969 = vmatprep.subr.bf16.mxu0 %v506
    %970 = vmatpush1.bf16.msra.mxu0 %v505
    %971 = vmatprep.subr.bf16.mxu0 %v503
    %972 = vmatpush1.bf16.msra.mxu0 %v502
    %973 = vmatprep.subr.bf16.mxu0 %v500
    %974 = vmatpush1.bf16.msra.mxu0 %v499
    %975 = vmatprep.subr.bf16.mxu0 %v497
    %976 = vmatpush1.bf16.msra.mxu0 %v496
    %977 = vmatprep.subr.bf16.mxu0 %v494
    %978 = vmatpush1.bf16.msra.mxu0 %v493
    %979 = vmatprep.subr.bf16.mxu0 %v491
    %980 = vmatpush1.bf16.msra.mxu0 %v490
    %981 = vmatprep.subr.bf16.mxu0 %v488
    %982 = vmatpush1.bf16.msra.mxu0 %v487
    %983 = vmatprep.subr.bf16.mxu0 0
    %984 = vmatpush2.bf16.msra.mxu0 0
    %985 = vmatprep.subr.bf16.mxu0 0
    %986 = vmatpush2.bf16.msra.mxu0 0
    %987 = vmatprep.subr.bf16.mxu0 0
    %988 = vmatpush2.bf16.msra.mxu0 0
    %989 = vmatprep.subr.bf16.mxu0 0
    %990 = vmatpush2.bf16.msra.mxu0 0
    %991 = vmatprep.subr.bf16.mxu0 0
    %992 = vmatpush2.bf16.msra.mxu0 0
    %993 = vmatprep.subr.bf16.mxu0 0
    %994 = vmatpush2.bf16.msra.mxu0 0
    %995 = vmatprep.subr.bf16.mxu0 0
    %996 = vmatpush2.bf16.msra.mxu0 0
    %997 = vmatprep.subr.bf16.mxu0 0
    %998 = vmatpush2.bf16.msra.mxu0 0
    %999 = vmatprep.mubr.bf16.mxu0 0
    %1000 = vmatmul.mubr.bf16.gmra.mxu0 %v966
    %v1001 = vpop.f32.mrf.mxu0
    %v1002 = vadd.f32 0.0, %v1001
    %v1003 = vpop.f32.mrf.mxu0
    %v1004 = vadd.f32 0.0, %v1003
    %v1005 = vpop.f32.mrf.mxu0
    %v1006 = vpop.f32.mrf.mxu0
    %1007 = vdwg.mxu0
    %1008 = vmatprep.subr.bf16.mxu0 0
    %1009 = vmatpush1.bf16.msra.mxu0 %v510
    %1010 = vmatprep.subr.bf16.mxu0 0
    %1011 = vmatpush1.bf16.msra.mxu0 %v507
    %1012 = vmatprep.subr.bf16.mxu0 0
    %1013 = vmatpush1.bf16.msra.mxu0 %v504
    %1014 = vmatprep.subr.bf16.mxu0 0
    %1015 = vmatpush1.bf16.msra.mxu0 %v501
    %1016 = vmatprep.subr.bf16.mxu0 0
    %1017 = vmatpush1.bf16.msra.mxu0 %v498
    %1018 = vmatprep.subr.bf16.mxu0 0
    %1019 = vmatpush1.bf16.msra.mxu0 %v495
    %1020 = vmatprep.subr.bf16.mxu0 0
    %1021 = vmatpush1.bf16.msra.mxu0 %v492
    %1022 = vmatprep.subr.bf16.mxu0 0
    %1023 = vmatpush1.bf16.msra.mxu0 %v489
    %1024 = vmatprep.subr.bf16.mxu0 0
    %1025 = vmatpush2.bf16.msra.mxu0 0
    %1026 = vmatprep.subr.bf16.mxu0 0
    %1027 = vmatpush2.bf16.msra.mxu0 0
    %1028 = vmatprep.subr.bf16.mxu0 0
    %1029 = vmatpush2.bf16.msra.mxu0 0
    %1030 = vmatprep.subr.bf16.mxu0 0
    %1031 = vmatpush2.bf16.msra.mxu0 0
    %1032 = vmatprep.subr.bf16.mxu0 0
    %1033 = vmatpush2.bf16.msra.mxu0 0
    %1034 = vmatprep.subr.bf16.mxu0 0
    %1035 = vmatpush2.bf16.msra.mxu0 0
    %1036 = vmatprep.subr.bf16.mxu0 0
    %1037 = vmatpush2.bf16.msra.mxu0 0
    %1038 = vmatprep.subr.bf16.mxu0 0
    %1039 = vmatpush2.bf16.msra.mxu0 0
    %1040 = vmatprep.mubr.bf16.mxu0 0
    %1041 = vmatmul.mubr.bf16.gmra.mxu0 %v966
    %v1042 = vpop.f32.mrf.mxu0
    %v1043 = vadd.f32 0.0, %v1042
    %v1044 = vpop.f32.mrf.mxu0
    %v1045 = vpop.f32.mrf.mxu0
    %v1046 = vpop.f32.mrf.mxu0
    %1047 = vdwg.mxu0
    %v1048 = vadd.f32 %v963, %v1002
    %v1049 = vxor.u32 %v1048, 2147483648
    %v1050 = vmul.f32 %v1049, 1.442695
    %v1051 = vpow.pop %v1050
    %v1052 = vadd.f32 %v1051, 1.0
    %v1053 = vrcp.pop %v1052
    %v1054 = vmul.f32 1.0, %v1053
    %v1055 = vadd.f32 %v964, %v1004
    %v1056 = vxor.u32 %v1055, 2147483648
    %v1057 = vmul.f32 %v1056, 1.442695
    %v1058 = vpow.pop %v1057
    %v1059 = vadd.f32 %v1058, 1.0
    %v1060 = vrcp.pop %v1059
    %v1061 = vmul.f32 1.0, %v1060
    %v1062 = vadd.f32 %v1043, %v400
    %v1063 = vmul.f32 %v1054, %v1062
    %v1064 = vadd.f32 %v965, %v1063
    %v1065 = vtanh.pop %v1064
    %v1066 = vsub.f32 1.0, %v1061
    %v1067 = vmul.f32 %v1066, %v1065
    %v1068 = vmul.f32 %v1061, %v961
    %v1069 = vadd.f32 %v1067, %v1068
    %s1070 = scalar_lea.vmem [#allocation3], 120
    %v1071 = vld [vmem:[%s1070] sm:$0xff]
    %v1072 = vld [vmem:[%s1070 + $0x8] sm:$0xff]
    %v1073 = vld [vmem:[%s1070 + $0x10] sm:$0xff]
    %v1074 = vpack.c.bf16 %v1069, %v1069
    %1075 = vmatprep.subr.bf16.mxu0 %v509
    %1076 = vmatpush1.bf16.msra.mxu0 %v508
    %1077 = vmatprep.subr.bf16.mxu0 %v506
    %1078 = vmatpush1.bf16.msra.mxu0 %v505
    %1079 = vmatprep.subr.bf16.mxu0 %v503
    %1080 = vmatpush1.bf16.msra.mxu0 %v502
    %1081 = vmatprep.subr.bf16.mxu0 %v500
    %1082 = vmatpush1.bf16.msra.mxu0 %v499
    %1083 = vmatprep.subr.bf16.mxu0 %v497
    %1084 = vmatpush1.bf16.msra.mxu0 %v496
    %1085 = vmatprep.subr.bf16.mxu0 %v494
    %1086 = vmatpush1.bf16.msra.mxu0 %v493
    %1087 = vmatprep.subr.bf16.mxu0 %v491
    %1088 = vmatpush1.bf16.msra.mxu0 %v490
    %1089 = vmatprep.subr.bf16.mxu0 %v488
    %1090 = vmatpush1.bf16.msra.mxu0 %v487
    %1091 = vmatprep.subr.bf16.mxu0 0
    %1092 = vmatpush2.bf16.msra.mxu0 0
    %1093 = vmatprep.subr.bf16.mxu0 0
    %1094 = vmatpush2.bf16.msra.mxu0 0
    %1095 = vmatprep.subr.bf16.mxu0 0
    %1096 = vmatpush2.bf16.msra.mxu0 0
    %1097 = vmatprep.subr.bf16.mxu0 0
    %1098 = vmatpush2.bf16.msra.mxu0 0
    %1099 = vmatprep.subr.bf16.mxu0 0
    %1100 = vmatpush2.bf16.msra.mxu0 0
    %1101 = vmatprep.subr.bf16.mxu0 0
    %1102 = vmatpush2.bf16.msra.mxu0 0
    %1103 = vmatprep.subr.bf16.mxu0 0
    %1104 = vmatpush2.bf16.msra.mxu0 0
    %1105 = vmatprep.subr.bf16.mxu0 0
    %1106 = vmatpush2.bf16.msra.mxu0 0
    %1107 = vmatprep.mubr.bf16.mxu0 0
    %1108 = vmatmul.mubr.bf16.gmra.mxu0 %v1074
    %v1109 = vpop.f32.mrf.mxu0
    %v1110 = vadd.f32 0.0, %v1109
    %v1111 = vpop.f32.mrf.mxu0
    %v1112 = vadd.f32 0.0, %v1111
    %v1113 = vpop.f32.mrf.mxu0
    %v1114 = vpop.f32.mrf.mxu0
    %1115 = vdwg.mxu0
    %1116 = vmatprep.subr.bf16.mxu0 0
    %1117 = vmatpush1.bf16.msra.mxu0 %v510
    %1118 = vmatprep.subr.bf16.mxu0 0
    %1119 = vmatpush1.bf16.msra.mxu0 %v507
    %1120 = vmatprep.subr.bf16.mxu0 0
    %1121 = vmatpush1.bf16.msra.mxu0 %v504
    %1122 = vmatprep.subr.bf16.mxu0 0
    %1123 = vmatpush1.bf16.msra.mxu0 %v501
    %1124 = vmatprep.subr.bf16.mxu0 0
    %1125 = vmatpush1.bf16.msra.mxu0 %v498
    %1126 = vmatprep.subr.bf16.mxu0 0
    %1127 = vmatpush1.bf16.msra.mxu0 %v495
    %1128 = vmatprep.subr.bf16.mxu0 0
    %1129 = vmatpush1.bf16.msra.mxu0 %v492
    %1130 = vmatprep.subr.bf16.mxu0 0
    %1131 = vmatpush1.bf16.msra.mxu0 %v489
    %1132 = vmatprep.subr.bf16.mxu0 0
    %1133 = vmatpush2.bf16.msra.mxu0 0
    %1134 = vmatprep.subr.bf16.mxu0 0
    %1135 = vmatpush2.bf16.msra.mxu0 0
    %1136 = vmatprep.subr.bf16.mxu0 0
    %1137 = vmatpush2.bf16.msra.mxu0 0
    %1138 = vmatprep.subr.bf16.mxu0 0
    %1139 = vmatpush2.bf16.msra.mxu0 0
    %1140 = vmatprep.subr.bf16.mxu0 0
    %1141 = vmatpush2.bf16.msra.mxu0 0
    %1142 = vmatprep.subr.bf16.mxu0 0
    %1143 = vmatpush2.bf16.msra.mxu0 0
    %1144 = vmatprep.subr.bf16.mxu0 0
    %1145 = vmatpush2.bf16.msra.mxu0 0
    %1146 = vmatprep.subr.bf16.mxu0 0
    %1147 = vmatpush2.bf16.msra.mxu0 0
    %1148 = vmatprep.mubr.bf16.mxu0 0
    %1149 = vmatmul.mubr.bf16.gmra.mxu0 %v1074
    %v1150 = vpop.f32.mrf.mxu0
    %v1151 = vadd.f32 0.0, %v1150
    %v1152 = vpop.f32.mrf.mxu0
    %v1153 = vpop.f32.mrf.mxu0
    %v1154 = vpop.f32.mrf.mxu0
    %1155 = vdwg.mxu0
    %v1156 = vadd.f32 %v1071, %v1110
    %v1157 = vxor.u32 %v1156, 2147483648
    %v1158 = vmul.f32 %v1157, 1.442695
    %v1159 = vpow.pop %v1158
    %v1160 = vadd.f32 %v1159, 1.0
    %v1161 = vrcp.pop %v1160
    %v1162 = vmul.f32 1.0, %v1161
    %v1163 = vadd.f32 %v1072, %v1112
    %v1164 = vxor.u32 %v1163, 2147483648
    %v1165 = vmul.f32 %v1164, 1.442695
    %v1166 = vpow.pop %v1165
    %v1167 = vadd.f32 %v1166, 1.0
    %v1168 = vrcp.pop %v1167
    %v1169 = vmul.f32 1.0, %v1168
    %v1170 = vadd.f32 %v1151, %v400
    %v1171 = vmul.f32 %v1162, %v1170
    %v1172 = vadd.f32 %v1073, %v1171
    %v1173 = vtanh.pop %v1172
    %v1174 = vsub.f32 1.0, %v1169
    %v1175 = vmul.f32 %v1174, %v1173
    %v1176 = vmul.f32 %v1169, %v1069
    %v1177 = vadd.f32 %v1175, %v1176
    %s1178 = scalar_lea.vmem [#allocation3], 144
    %v1179 = vld [vmem:[%s1178] sm:$0xff]
    %v1180 = vld [vmem:[%s1178 + $0x8] sm:$0xff]
    %v1181 = vld [vmem:[%s1178 + $0x10] sm:$0xff]
    %v1182 = vpack.c.bf16 %v1177, %v1177
    %1183 = vmatprep.subr.bf16.mxu0 %v509
    %1184 = vmatpush1.bf16.msra.mxu0 %v508
    %1185 = vmatprep.subr.bf16.mxu0 %v506
    %1186 = vmatpush1.bf16.msra.mxu0 %v505
    %1187 = vmatprep.subr.bf16.mxu0 %v503
    %1188 = vmatpush1.bf16.msra.mxu0 %v502
    %1189 = vmatprep.subr.bf16.mxu0 %v500
    %1190 = vmatpush1.bf16.msra.mxu0 %v499
    %1191 = vmatprep.subr.bf16.mxu0 %v497
    %1192 = vmatpush1.bf16.msra.mxu0 %v496
    %1193 = vmatprep.subr.bf16.mxu0 %v494
    %1194 = vmatpush1.bf16.msra.mxu0 %v493
    %1195 = vmatprep.subr.bf16.mxu0 %v491
    %1196 = vmatpush1.bf16.msra.mxu0 %v490
    %1197 = vmatprep.subr.bf16.mxu0 %v488
    %1198 = vmatpush1.bf16.msra.mxu0 %v487
    %1199 = vmatprep.subr.bf16.mxu0 0
    %1200 = vmatpush2.bf16.msra.mxu0 0
    %1201 = vmatprep.subr.bf16.mxu0 0
    %1202 = vmatpush2.bf16.msra.mxu0 0
    %1203 = vmatprep.subr.bf16.mxu0 0
    %1204 = vmatpush2.bf16.msra.mxu0 0
    %1205 = vmatprep.subr.bf16.mxu0 0
    %1206 = vmatpush2.bf16.msra.mxu0 0
    %1207 = vmatprep.subr.bf16.mxu0 0
    %1208 = vmatpush2.bf16.msra.mxu0 0
    %1209 = vmatprep.subr.bf16.mxu0 0
    %1210 = vmatpush2.bf16.msra.mxu0 0
    %1211 = vmatprep.subr.bf16.mxu0 0
    %1212 = vmatpush2.bf16.msra.mxu0 0
    %1213 = vmatprep.subr.bf16.mxu0 0
    %1214 = vmatpush2.bf16.msra.mxu0 0
    %1215 = vmatprep.mubr.bf16.mxu0 0
    %1216 = vmatmul.mubr.bf16.gmra.mxu0 %v1182
    %v1217 = vpop.f32.mrf.mxu0
    %v1218 = vadd.f32 0.0, %v1217
    %v1219 = vpop.f32.mrf.mxu0
    %v1220 = vadd.f32 0.0, %v1219
    %v1221 = vpop.f32.mrf.mxu0
    %v1222 = vpop.f32.mrf.mxu0
    %1223 = vdwg.mxu0
    %1224 = vmatprep.subr.bf16.mxu0 0
    %1225 = vmatpush1.bf16.msra.mxu0 %v510
    %1226 = vmatprep.subr.bf16.mxu0 0
    %1227 = vmatpush1.bf16.msra.mxu0 %v507
    %1228 = vmatprep.subr.bf16.mxu0 0
    %1229 = vmatpush1.bf16.msra.mxu0 %v504
    %1230 = vmatprep.subr.bf16.mxu0 0
    %1231 = vmatpush1.bf16.msra.mxu0 %v501
    %1232 = vmatprep.subr.bf16.mxu0 0
    %1233 = vmatpush1.bf16.msra.mxu0 %v498
    %1234 = vmatprep.subr.bf16.mxu0 0
    %1235 = vmatpush1.bf16.msra.mxu0 %v495
    %1236 = vmatprep.subr.bf16.mxu0 0
    %1237 = vmatpush1.bf16.msra.mxu0 %v492
    %1238 = vmatprep.subr.bf16.mxu0 0
    %1239 = vmatpush1.bf16.msra.mxu0 %v489
    %1240 = vmatprep.subr.bf16.mxu0 0
    %1241 = vmatpush2.bf16.msra.mxu0 0
    %1242 = vmatprep.subr.bf16.mxu0 0
    %1243 = vmatpush2.bf16.msra.mxu0 0
    %1244 = vmatprep.subr.bf16.mxu0 0
    %1245 = vmatpush2.bf16.msra.mxu0 0
    %1246 = vmatprep.subr.bf16.mxu0 0
    %1247 = vmatpush2.bf16.msra.mxu0 0
    %1248 = vmatprep.subr.bf16.mxu0 0
    %1249 = vmatpush2.bf16.msra.mxu0 0
    %1250 = vmatprep.subr.bf16.mxu0 0
    %1251 = vmatpush2.bf16.msra.mxu0 0
    %1252 = vmatprep.subr.bf16.mxu0 0
    %1253 = vmatpush2.bf16.msra.mxu0 0
    %1254 = vmatprep.subr.bf16.mxu0 0
    %1255 = vmatpush2.bf16.msra.mxu0 0
    %1256 = vmatprep.mubr.bf16.mxu0 0
    %1257 = vmatmul.mubr.bf16.gmra.mxu0 %v1182
    %v1258 = vpop.f32.mrf.mxu0
    %v1259 = vadd.f32 0.0, %v1258
    %v1260 = vpop.f32.mrf.mxu0
    %v1261 = vpop.f32.mrf.mxu0
    %v1262 = vpop.f32.mrf.mxu0
    %1263 = vdwg.mxu0
    %v1264 = vadd.f32 %v1179, %v1218
    %v1265 = vxor.u32 %v1264, 2147483648
    %v1266 = vmul.f32 %v1265, 1.442695
    %v1267 = vpow.pop %v1266
    %v1268 = vadd.f32 %v1267, 1.0
    %v1269 = vrcp.pop %v1268
    %v1270 = vmul.f32 1.0, %v1269
    %v1271 = vadd.f32 %v1180, %v1220
    %v1272 = vxor.u32 %v1271, 2147483648
    %v1273 = vmul.f32 %v1272, 1.442695
    %v1274 = vpow.pop %v1273
    %v1275 = vadd.f32 %v1274, 1.0
    %v1276 = vrcp.pop %v1275
    %v1277 = vmul.f32 1.0, %v1276
    %v1278 = vadd.f32 %v1259, %v400
    %v1279 = vmul.f32 %v1270, %v1278
    %v1280 = vadd.f32 %v1181, %v1279
    %v1281 = vtanh.pop %v1280
    %v1282 = vsub.f32 1.0, %v1277
    %v1283 = vmul.f32 %v1282, %v1281
    %v1284 = vmul.f32 %v1277, %v1177
    %v1285 = vadd.f32 %v1283, %v1284
    %s1286 = scalar_lea.vmem [#allocation3], 168
    %v1287 = vld [vmem:[%s1286] sm:$0xff]
    %v1288 = vld [vmem:[%s1286 + $0x8] sm:$0xff]
    %v1289 = vld [vmem:[%s1286 + $0x10] sm:$0xff]
    %v1290 = vpack.c.bf16 %v1285, %v1285
    %1291 = vmatprep.subr.bf16.mxu0 %v509
    %1292 = vmatpush1.bf16.msra.mxu0 %v508
    %1293 = vmatprep.subr.bf16.mxu0 %v506
    %1294 = vmatpush1.bf16.msra.mxu0 %v505
    %1295 = vmatprep.subr.bf16.mxu0 %v503
    %1296 = vmatpush1.bf16.msra.mxu0 %v502
    %1297 = vmatprep.subr.bf16.mxu0 %v500
    %1298 = vmatpush1.bf16.msra.mxu0 %v499
    %1299 = vmatprep.subr.bf16.mxu0 %v497
    %1300 = vmatpush1.bf16.msra.mxu0 %v496
    %1301 = vmatprep.subr.bf16.mxu0 %v494
    %1302 = vmatpush1.bf16.msra.mxu0 %v493
    %1303 = vmatprep.subr.bf16.mxu0 %v491
    %1304 = vmatpush1.bf16.msra.mxu0 %v490
    %1305 = vmatprep.subr.bf16.mxu0 %v488
    %1306 = vmatpush1.bf16.msra.mxu0 %v487
    %1307 = vmatprep.subr.bf16.mxu0 0
    %1308 = vmatpush2.bf16.msra.mxu0 0
    %1309 = vmatprep.subr.bf16.mxu0 0
    %1310 = vmatpush2.bf16.msra.mxu0 0
    %1311 = vmatprep.subr.bf16.mxu0 0
    %1312 = vmatpush2.bf16.msra.mxu0 0
    %1313 = vmatprep.subr.bf16.mxu0 0
    %1314 = vmatpush2.bf16.msra.mxu0 0
    %1315 = vmatprep.subr.bf16.mxu0 0
    %1316 = vmatpush2.bf16.msra.mxu0 0
    %1317 = vmatprep.subr.bf16.mxu0 0
    %1318 = vmatpush2.bf16.msra.mxu0 0
    %1319 = vmatprep.subr.bf16.mxu0 0
    %1320 = vmatpush2.bf16.msra.mxu0 0
    %1321 = vmatprep.subr.bf16.mxu0 0
    %1322 = vmatpush2.bf16.msra.mxu0 0
    %1323 = vmatprep.mubr.bf16.mxu0 0
    %1324 = vmatmul.mubr.bf16.gmra.mxu0 %v1290
    %v1325 = vpop.f32.mrf.mxu0
    %v1326 = vadd.f32 0.0, %v1325
    %v1327 = vpop.f32.mrf.mxu0
    %v1328 = vadd.f32 0.0, %v1327
    %v1329 = vpop.f32.mrf.mxu0
    %v1330 = vpop.f32.mrf.mxu0
    %1331 = vdwg.mxu0
    %1332 = vmatprep.subr.bf16.mxu0 0
    %1333 = vmatpush1.bf16.msra.mxu0 %v510
    %1334 = vmatprep.subr.bf16.mxu0 0
    %1335 = vmatpush1.bf16.msra.mxu0 %v507
    %1336 = vmatprep.subr.bf16.mxu0 0
    %1337 = vmatpush1.bf16.msra.mxu0 %v504
    %1338 = vmatprep.subr.bf16.mxu0 0
    %1339 = vmatpush1.bf16.msra.mxu0 %v501
    %1340 = vmatprep.subr.bf16.mxu0 0
    %1341 = vmatpush1.bf16.msra.mxu0 %v498
    %1342 = vmatprep.subr.bf16.mxu0 0
    %1343 = vmatpush1.bf16.msra.mxu0 %v495
    %1344 = vmatprep.subr.bf16.mxu0 0
    %1345 = vmatpush1.bf16.msra.mxu0 %v492
    %1346 = vmatprep.subr.bf16.mxu0 0
    %1347 = vmatpush1.bf16.msra.mxu0 %v489
    %1348 = vmatprep.subr.bf16.mxu0 0
    %1349 = vmatpush2.bf16.msra.mxu0 0
    %1350 = vmatprep.subr.bf16.mxu0 0
    %1351 = vmatpush2.bf16.msra.mxu0 0
    %1352 = vmatprep.subr.bf16.mxu0 0
    %1353 = vmatpush2.bf16.msra.mxu0 0
    %1354 = vmatprep.subr.bf16.mxu0 0
    %1355 = vmatpush2.bf16.msra.mxu0 0
    %1356 = vmatprep.subr.bf16.mxu0 0
    %1357 = vmatpush2.bf16.msra.mxu0 0
    %1358 = vmatprep.subr.bf16.mxu0 0
    %1359 = vmatpush2.bf16.msra.mxu0 0
    %1360 = vmatprep.subr.bf16.mxu0 0
    %1361 = vmatpush2.bf16.msra.mxu0 0
    %1362 = vmatprep.subr.bf16.mxu0 0
    %1363 = vmatpush2.bf16.msra.mxu0 0
    %1364 = vmatprep.mubr.bf16.mxu0 0
    %1365 = vmatmul.mubr.bf16.gmra.mxu0 %v1290
    %v1366 = vpop.f32.mrf.mxu0
    %v1367 = vadd.f32 0.0, %v1366
    %v1368 = vpop.f32.mrf.mxu0
    %v1369 = vpop.f32.mrf.mxu0
    %v1370 = vpop.f32.mrf.mxu0
    %1371 = vdwg.mxu0
    %v1372 = vadd.f32 %v1287, %v1326
    %v1373 = vxor.u32 %v1372, 2147483648
    %v1374 = vmul.f32 %v1373, 1.442695
    %v1375 = vpow.pop %v1374
    %v1376 = vadd.f32 %v1375, 1.0
    %v1377 = vrcp.pop %v1376
    %v1378 = vmul.f32 1.0, %v1377
    %v1379 = vadd.f32 %v1288, %v1328
    %v1380 = vxor.u32 %v1379, 2147483648
    %v1381 = vmul.f32 %v1380, 1.442695
    %v1382 = vpow.pop %v1381
    %v1383 = vadd.f32 %v1382, 1.0
    %v1384 = vrcp.pop %v1383
    %v1385 = vmul.f32 1.0, %v1384
    %v1386 = vadd.f32 %v1367, %v400
    %v1387 = vmul.f32 %v1378, %v1386
    %v1388 = vadd.f32 %v1289, %v1387
    %v1389 = vtanh.pop %v1388
    %v1390 = vsub.f32 1.0, %v1385
    %v1391 = vmul.f32 %v1390, %v1389
    %v1392 = vmul.f32 %v1385, %v1285
    %v1393 = vadd.f32 %v1391, %v1392
    %1394 = vst [vmem:[#allocation2] sm:$0xff] %v1393
    // Predicated region
    $region70: #{tpu_custom_call.1} parent=1 // pred_check
      %p1395 = pneg %p117
    $region71: #{tpu_custom_call.1} parent=1 // pred_check_branch
      %1397 = sbr.rel (%p1395) target = $region73
    $region72: #{tpu_custom_call.1} parent=1 // pred_region
      %v1398 = vpack.c.bf16 %v1393, %v1393
      %v1399 = vld [vmem:[#allocation12] sm:$0xf]
      %v1400 = vld [vmem:[#allocation12 + $0x4] sm:$0xf]
      %v1401 = vld [vmem:[#allocation12 + $0x8] sm:$0xf]
      %v1402 = vld [vmem:[#allocation12 + $0xc] sm:$0xf]
      %v1403 = vld [vmem:[#allocation12 + $0x10] sm:$0xf]
      %v1404 = vld [vmem:[#allocation12 + $0x14] sm:$0xf]
      %v1405 = vld [vmem:[#allocation12 + $0x18] sm:$0xf]
      %v1406 = vld [vmem:[#allocation12 + $0x1c] sm:$0xf]
      %v1407 = vld [vmem:[#allocation12 + $0x20] sm:$0xf]
      %v1408 = vld [vmem:[#allocation12 + $0x24] sm:$0xf]
      %v1409 = vld [vmem:[#allocation12 + $0x28] sm:$0xf]
      %v1410 = vld [vmem:[#allocation12 + $0x2c] sm:$0xf]
      %v1411 = vld [vmem:[#allocation12 + $0x30] sm:$0xf]
      %v1412 = vld [vmem:[#allocation12 + $0x34] sm:$0xf]
      %v1413 = vld [vmem:[#allocation12 + $0x38] sm:$0xf]
      %v1414 = vld [vmem:[#allocation12 + $0x3c] sm:$0xf]
      %v1415 = vld [vmem:[%s7] sm:$0x1]
      %v1417 = vlaneseq
      %v1418 = vshrl.u32 %v1417, 7
      %v1419 = vsub.s32 0, %v1418
      %v1420 = vrot.slane %v1415, %v1419
      %v1438 = vunpack.c.l.b16 %v1399
      %v1439 = vunpack.c.l.b16 %v1400
      %v1440 = vunpack.c.l.b16 %v1401
      %v1441 = vunpack.c.l.b16 %v1402
      %v1442 = vunpack.c.l.b16 %v1403
      %v1443 = vunpack.c.l.b16 %v1404
      %v1444 = vunpack.c.l.b16 %v1405
      %v1445 = vunpack.c.l.b16 %v1406
      %v1446 = vunpack.c.l.b16 %v1407
      %v1447 = vunpack.c.l.b16 %v1408
      %v1448 = vunpack.c.l.b16 %v1409
      %v1449 = vunpack.c.l.b16 %v1410
      %v1450 = vunpack.c.l.b16 %v1411
      %v1451 = vunpack.c.l.b16 %v1412
      %v1452 = vunpack.c.l.b16 %v1413
      %v1453 = vunpack.c.l.b16 %v1414
      %v1454 = vpack.c.b16 %v1439, %v1438
      %v1455 = vpack.c.b16 %v1441, %v1440
      %v1456 = vpack.c.b16 %v1443, %v1442
      %v1457 = vpack.c.b16 %v1445, %v1444
      %v1458 = vpack.c.b16 %v1447, %v1446
      %v1459 = vpack.c.b16 %v1449, %v1448
      %v1460 = vpack.c.b16 %v1451, %v1450
      %v1461 = vpack.c.b16 %v1453, %v1452
      %1470 = vmatprep.subr.bf16.mxu0 0
      %1471 = vmatpush1.bf16.msra.mxu0 %v1461
      %1472 = vmatprep.subr.bf16.mxu0 0
      %1473 = vmatpush1.bf16.msra.mxu0 %v1460
      %1474 = vmatprep.subr.bf16.mxu0 0
      %1475 = vmatpush1.bf16.msra.mxu0 %v1459
      %1476 = vmatprep.subr.bf16.mxu0 0
      %1477 = vmatpush1.bf16.msra.mxu0 %v1458
      %1478 = vmatprep.subr.bf16.mxu0 0
      %1479 = vmatpush1.bf16.msra.mxu0 %v1457
      %1480 = vmatprep.subr.bf16.mxu0 0
      %1481 = vmatpush1.bf16.msra.mxu0 %v1456
      %1482 = vmatprep.subr.bf16.mxu0 0
      %1483 = vmatpush1.bf16.msra.mxu0 %v1455
      %1484 = vmatprep.subr.bf16.mxu0 0
      %1485 = vmatpush1.bf16.msra.mxu0 %v1454
      %1486 = vmatprep.subr.bf16.mxu0 0
      %1487 = vmatpush2.bf16.msra.mxu0 0
      %1488 = vmatprep.subr.bf16.mxu0 0
      %1489 = vmatpush2.bf16.msra.mxu0 0
      %1490 = vmatprep.subr.bf16.mxu0 0
      %1491 = vmatpush2.bf16.msra.mxu0 0
      %1492 = vmatprep.subr.bf16.mxu0 0
      %1493 = vmatpush2.bf16.msra.mxu0 0
      %1494 = vmatprep.subr.bf16.mxu0 0
      %1495 = vmatpush2.bf16.msra.mxu0 0
      %1496 = vmatprep.subr.bf16.mxu0 0
      %1497 = vmatpush2.bf16.msra.mxu0 0
      %1498 = vmatprep.subr.bf16.mxu0 0
      %1499 = vmatpush2.bf16.msra.mxu0 0
      %1500 = vmatprep.subr.bf16.mxu0 0
      %1501 = vmatpush2.bf16.msra.mxu0 0
      %1502 = vmatprep.mubr.bf16.mxu0 0
      %1503 = vmatmul.mubr.bf16.gmra.mxu0 %v1398
      %v1504 = vpop.f32.mrf.mxu0
      %v1505 = vadd.f32 %v1420, %v1504
      %v1506 = vpop.f32.mrf.mxu0
      %v1507 = vpop.f32.mrf.mxu0
      %v1508 = vpop.f32.mrf.mxu0
      %1509 = vdwg.mxu0
      %v1510 = vmax.f32 %v1505, 0.0
      %v1511 = vpack.c.bf16 %v1510, %v1510
      %v1512 = vld [vmem:[#allocation13] sm:$0xf]
      %v1513 = vld [vmem:[#allocation13 + $0x4] sm:$0xf]
      %v1514 = vld [vmem:[#allocation13 + $0x8] sm:$0xf]
      %v1515 = vld [vmem:[#allocation13 + $0xc] sm:$0xf]
      %v1516 = vld [vmem:[#allocation13 + $0x10] sm:$0xf]
      %v1517 = vld [vmem:[#allocation13 + $0x14] sm:$0xf]
      %v1518 = vld [vmem:[#allocation13 + $0x18] sm:$0xf]
      %v1519 = vld [vmem:[#allocation13 + $0x1c] sm:$0xf]
      %v1520 = vld [vmem:[#allocation13 + $0x20] sm:$0xf]
      %v1521 = vld [vmem:[#allocation13 + $0x24] sm:$0xf]
      %v1522 = vld [vmem:[#allocation13 + $0x28] sm:$0xf]
      %v1523 = vld [vmem:[#allocation13 + $0x2c] sm:$0xf]
      %v1524 = vld [vmem:[#allocation13 + $0x30] sm:$0xf]
      %v1525 = vld [vmem:[#allocation13 + $0x34] sm:$0xf]
      %v1526 = vld [vmem:[#allocation13 + $0x38] sm:$0xf]
      %v1527 = vld [vmem:[#allocation13 + $0x3c] sm:$0xf]
      %v1528 = vld [vmem:[%s9] sm:$0x1]
      %v1530 = vlaneseq
      %v1531 = vshrl.u32 %v1530, 7
      %v1532 = vsub.s32 0, %v1531
      %v1533 = vrot.slane %v1528, %v1532
      %v1551 = vunpack.c.l.b16 %v1512
      %v1552 = vunpack.c.l.b16 %v1513
      %v1553 = vunpack.c.l.b16 %v1514
      %v1554 = vunpack.c.l.b16 %v1515
      %v1555 = vunpack.c.l.b16 %v1516
      %v1556 = vunpack.c.l.b16 %v1517
      %v1557 = vunpack.c.l.b16 %v1518
      %v1558 = vunpack.c.l.b16 %v1519
      %v1559 = vunpack.c.l.b16 %v1520
      %v1560 = vunpack.c.l.b16 %v1521
      %v1561 = vunpack.c.l.b16 %v1522
      %v1562 = vunpack.c.l.b16 %v1523
      %v1563 = vunpack.c.l.b16 %v1524
      %v1564 = vunpack.c.l.b16 %v1525
      %v1565 = vunpack.c.l.b16 %v1526
      %v1566 = vunpack.c.l.b16 %v1527
      %v1567 = vpack.c.b16 %v1552, %v1551
      %v1568 = vpack.c.b16 %v1554, %v1553
      %v1569 = vpack.c.b16 %v1556, %v1555
      %v1570 = vpack.c.b16 %v1558, %v1557
      %v1571 = vpack.c.b16 %v1560, %v1559
      %v1572 = vpack.c.b16 %v1562, %v1561
      %v1573 = vpack.c.b16 %v1564, %v1563
      %v1574 = vpack.c.b16 %v1566, %v1565
      %1583 = vmatprep.subr.bf16.mxu0 0
      %1584 = vmatpush1.bf16.msra.mxu0 %v1574
      %1585 = vmatprep.subr.bf16.mxu0 0
      %1586 = vmatpush1.bf16.msra.mxu0 %v1573
      %1587 = vmatprep.subr.bf16.mxu0 0
      %1588 = vmatpush1.bf16.msra.mxu0 %v1572
      %1589 = vmatprep.subr.bf16.mxu0 0
      %1590 = vmatpush1.bf16.msra.mxu0 %v1571
      %1591 = vmatprep.subr.bf16.mxu0 0
      %1592 = vmatpush1.bf16.msra.mxu0 %v1570
      %1593 = vmatprep.subr.bf16.mxu0 0
      %1594 = vmatpush1.bf16.msra.mxu0 %v1569
      %1595 = vmatprep.subr.bf16.mxu0 0
      %1596 = vmatpush1.bf16.msra.mxu0 %v1568
      %1597 = vmatprep.subr.bf16.mxu0 0
      %1598 = vmatpush1.bf16.msra.mxu0 %v1567
      %1599 = vmatprep.subr.bf16.mxu0 0
      %1600 = vmatpush2.bf16.msra.mxu0 0
      %1601 = vmatprep.subr.bf16.mxu0 0
      %1602 = vmatpush2.bf16.msra.mxu0 0
      %1603 = vmatprep.subr.bf16.mxu0 0
      %1604 = vmatpush2.bf16.msra.mxu0 0
      %1605 = vmatprep.subr.bf16.mxu0 0
      %1606 = vmatpush2.bf16.msra.mxu0 0
      %1607 = vmatprep.subr.bf16.mxu0 0
      %1608 = vmatpush2.bf16.msra.mxu0 0
      %1609 = vmatprep.subr.bf16.mxu0 0
      %1610 = vmatpush2.bf16.msra.mxu0 0
      %1611 = vmatprep.subr.bf16.mxu0 0
      %1612 = vmatpush2.bf16.msra.mxu0 0
      %1613 = vmatprep.subr.bf16.mxu0 0
      %1614 = vmatpush2.bf16.msra.mxu0 0
      %1615 = vmatprep.mubr.bf16.mxu0 0
      %1616 = vmatmul.mubr.bf16.gmra.mxu0 %v1511
      %v1617 = vpop.f32.mrf.mxu0
      %v1618 = vadd.f32 %v1533, %v1617
      %v1619 = vpop.f32.mrf.mxu0
      %v1620 = vpop.f32.mrf.mxu0
      %v1621 = vpop.f32.mrf.mxu0
      %1622 = vdwg.mxu0
      %1623 = vst [vmem:[#allocation15] sm:$0xff] %v1618
    $region73: #{tpu_custom_call.1} parent=1 // pred_fallthru
      _
    // Predicated region
    $region74: #{tpu_custom_call.1} parent=1 // pred_check
      _
    $region75: #{tpu_custom_call.1} parent=1 // pred_check_branch
      %1625 = sbr.rel (0) target = $region77
    $region76: #{tpu_custom_call.1} parent=1 // pred_region
      %s1627 = ssub.s32 128, 128
      %1628 = vsyncadd [#allocation6], %s1627
      %s1630 = sshll.u32 [#allocation15], 4
      %s1631 = int_to_ptr.vmem [resolvable:$true] %s1630
      %1633 = dma.vmem_to_hbm [thread:$0]  %s1631, 128, %s10, [#allocation6]
    $region77: #{tpu_custom_call.1} parent=1 // pred_fallthru
      _
    // Predicated region
    $region78: #{tpu_custom_call.1} parent=1 // pred_check
      _
    $region79: #{tpu_custom_call.1} parent=1 // pred_check_branch
      %1635 = sbr.rel (0) target = $region81
    $region80: #{tpu_custom_call.1} parent=1 // pred_region
      %1636 = dma.done [#allocation6], 128
    $region81: #{tpu_custom_call.1} parent=1 // pred_fallthru
      _
    %1637 = vsyncpa [#allocation5], 1
    %1638 = vsyncpa [#allocation8], 1
    %1639 = vsyncpa [#allocation11], 1
    %1640 = vsyncpa [#allocation14], 1
    %1641 = vsyncpa [#allocation6], 1

</llo_original>
